<compile_context>
chip_gen: v5e
topology: v5e:2x2
jax: 0.10.0
libtpu: 0.0.40
codegen_flags: <defaults>
</compile_context>

<pallas_src>
import math

import jax
import jax.numpy as jnp
from jax.experimental import pallas as pl
from jax.experimental.pallas import tpu as pltpu


N_SPEED = 5
N_ANGLE = 5
EMB_DIM = 32                       # per-condition sinusoidal embedding width
HALF = EMB_DIM // 2                # 16 unique phases per condition
N_COND = N_SPEED + N_ANGLE         # 10
D_PH = N_COND * HALF               # 160 unique phases (cos/sin taken on these)
D_IN = N_COND * EMB_DIM            # 320 (reference embedding width)
D_H1, D_H2, D_OUT = 512, 128, 8
D_OUT_PAD = 128                    # lane-dense padded output width
TB_MAX = 1024                      # max batch tile (amortizes ~0.35us/step overhead)


def _cdiv(a, b):
    return -(-a // b)


def _round_up(x, m):
    return _cdiv(x, m) * m


# ----------------------- embedding constant (host-side) ---------------------
def make_embedding_constants(max_period=10000):
    """E[n, n*16 + d] = freqs[d] * scale_n  (scale = 1/3.6 for speed cols,
    1/780 for angle cols), zero elsewhere.  A single [B,10] @ [10,160] matmul
    then yields the 160 unique sinusoid phases; cos/sin of those phases are
    the cos-half / sin-half of the reference 320-wide embedding."""
    freqs = jnp.exp(
        -math.log(max_period) * jnp.arange(HALF, dtype=jnp.float32) / HALF
    )                                                      # [16]
    eye = jnp.eye(N_COND, dtype=jnp.float32)               # [10, 10]
    E = (eye[:, :, None] * freqs[None, None, :]).reshape(N_COND, D_PH)  # [10,160]
    scales = jnp.concatenate(
        [jnp.full((N_SPEED,), 1.0 / 3.6, jnp.float32),
         jnp.full((N_ANGLE,), 1.0 / 780.0, jnp.float32)]
    )                                                      # [10]
    return E * scales[:, None]                             # [10, 160] f32


# ------------------------------ Pallas kernel --------------------------------
def mlp_kernel(x_ref, e_ref, w1c_ref, w1s_ref, b1_ref, w2_ref, b2_ref,
               w3_ref, b3_ref, o_ref):
    f32 = jnp.float32

    # Fused scale + concat + sinusoidal embedding: one tiny one-hot*freq
    # matmul -> 160 unique phases, then cos/sin on disjoint halves (no
    # duplicated phases, no select).  HIGHEST keeps f32 phases exact; the
    # extra MXU passes on a K=10 dot are negligible.
    a = jnp.dot(x_ref[...], e_ref[...],
                preferred_element_type=f32,
                precision=jax.lax.Precision.HIGHEST)       # [TB, 160] f32
    ca = jnp.cos(a).astype(jnp.bfloat16)                   # [TB, 160]
    sa = jnp.sin(a).astype(jnp.bfloat16)                   # [TB, 160]

    # sigmoid folded away host-side: sigmoid(z) = 0.5 + 0.5*tanh(z/2), the
    # 0.5 scales live in (W1,b1)/(W2,b2) and the +0.5 offsets in the next
    # layer's bias, so a bare tanh (single EUP op/element) is emitted here.
    t1 = jnp.tanh(jnp.dot(ca, w1c_ref[...], preferred_element_type=f32)
                  + jnp.dot(sa, w1s_ref[...], preferred_element_type=f32)
                  + b1_ref[...])                            # [TB, 512]
    t2 = jnp.tanh(jnp.dot(t1.astype(jnp.bfloat16), w2_ref[...],
                          preferred_element_type=f32)
                  + b2_ref[...])                            # [TB, 128]
    o_ref[...] = (jnp.dot(t2.astype(jnp.bfloat16), w3_ref[...],
                          preferred_element_type=f32)
                  + b3_ref[...])                            # [TB, 128]


def mlp_pallas(speed, angle, kparams, e_const):
    """speed, angle: [B, 5] f32.  Returns [B, 8] f32."""
    w1c, w1s, b1, w2, b2, w3p, b3p = kparams
    B = speed.shape[0]
    x = jnp.concatenate([speed, angle], axis=1)            # [B, 10] (scales in E)

    # Batch tiling: minimal padding (TB chosen per call instead of rounding B
    # up to a full 512/1024 block); for B > 16 guarantee >= 2 grid steps so
    # v7x's two TensorCores both get work; TB capped at TB_MAX.
    if B <= 16:
        n_tiles = 1
    else:
        n_tiles = max(2, _cdiv(B, TB_MAX))
    TB = _round_up(_cdiv(B, n_tiles), 8)
    B_pad = TB * n_tiles
    if B_pad != B:
        x = jnp.pad(x, ((0, B_pad - B), (0, 0)))
    grid = (n_tiles,)

    def rep_spec(arr):  # full-array block, constant index -> fetched once, resident
        return pl.BlockSpec(arr.shape, lambda i: (0, 0))

    flops = 2 * B_pad * (N_COND * D_PH + 2 * D_PH * D_H1 + D_H1 * D_H2
                         + D_H2 * D_OUT_PAD)
    transcendentals = B_pad * (2 * D_PH + D_H1 + D_H2)      # cos+sin+2*tanh
    bytes_accessed = (
        sum(int(a.size) * a.dtype.itemsize
            for a in (e_const, w1c, w1s, b1, w2, b2, w3p, b3p))
        + B_pad * (N_COND + D_OUT_PAD) * 4
    )

    out = pl.pallas_call(
        mlp_kernel,
        out_shape=jax.ShapeDtypeStruct((B_pad, D_OUT_PAD), jnp.float32),
        grid=grid,
        in_specs=[
            pl.BlockSpec((TB, N_COND), lambda i: (i, 0)),
            rep_spec(e_const),
            rep_spec(w1c), rep_spec(w1s), rep_spec(b1),
            rep_spec(w2), rep_spec(b2),
            rep_spec(w3p), rep_spec(b3p),
        ],
        out_specs=pl.BlockSpec((TB, D_OUT_PAD), lambda i: (i, 0)),
        compiler_params=pltpu.CompilerParams(
            dimension_semantics=("parallel",),   # batch tiles shard across TCs on v7x
            vmem_limit_bytes=32 * 1024 * 1024,   # covers TB=1024 on v5e's 16MiB default
        ),
        cost_estimate=pl.CostEstimate(
            flops=flops,
            transcendentals=transcendentals,
            bytes_accessed=bytes_accessed,
        ),
    )(x, e_const, w1c, w1s, b1, w2, b2, w3p, b3p)
    return out[:B, :D_OUT]


# ------------------------------ Parameters -----------------------------------
def init_params(key):
    """f32 params, weights stored as [in, out]; uniform(-1/sqrt(in), 1/sqrt(in))
    (matches nn.Linear's default init distribution)."""
    dims = [(D_IN, D_H1), (D_H1, D_H2), (D_H2, D_OUT)]
    params = []
    for (din, dout) in dims:
        key, kw, kb = jax.random.split(key, 3)
        bound = 1.0 / math.sqrt(din)
        w = jax.random.uniform(kw, (din, dout), jnp.float32, -bound, bound)
        b = jax.random.uniform(kb, (1, dout), jnp.float32, -bound, bound)
        params += [w, b]
    return params


def prepare_kernel_params(params_f32):
    """Split W1 into cos/sin halves (matching the 160-phase layout), fold the
    sigmoid -> tanh rewrite into the weights/biases, cast weights to bf16, and
    zero-pad L3 to a lane-dense 128-wide output.

      sigmoid(z) = 0.5 + 0.5*tanh(0.5*z)
      h1 = 0.5 + 0.5*t1,  t1 = tanh(emb @ (0.5*W1) + 0.5*b1)
      h2 = 0.5 + 0.5*t2,  t2 = tanh(t1 @ (0.25*W2) + 0.5*b2 + 0.25*colsum(W2))
      out = t2 @ (0.5*W3) + b3 + 0.5*colsum(W3)
    """
    w1, b1, w2, b2, w3, b3 = params_f32
    rows = jnp.arange(N_COND)[:, None] * EMB_DIM + jnp.arange(HALF)[None, :]
    cos_rows = rows.reshape(-1)            # rows of W1 hit by cos(phases)
    sin_rows = (rows + HALF).reshape(-1)   # rows of W1 hit by sin(phases)

    w1c = 0.5 * w1[cos_rows]               # [160, 512]
    w1s = 0.5 * w1[sin_rows]               # [160, 512]
    b1f = 0.5 * b1
    w2f = 0.25 * w2
    b2f = 0.5 * b2 + 0.25 * jnp.sum(w2, axis=0, keepdims=True)
    w3f = 0.5 * w3
    b3f = b3 + 0.5 * jnp.sum(w3, axis=0, keepdims=True)

    w3p = jnp.zeros((D_H2, D_OUT_PAD), jnp.float32).at[:, :D_OUT].set(w3f)
    b3p = jnp.zeros((1, D_OUT_PAD), jnp.float32).at[:, :D_OUT].set(b3f)
    return [
        w1c.astype(jnp.bfloat16), w1s.astype(jnp.bfloat16), b1f,
        w2f.astype(jnp.bfloat16), b2f,
        w3p.astype(jnp.bfloat16), b3p,
    ]


# ------------------------------ Forward passes -------------------------------
def mlp_forward(speed, angle, kparams, e_const):
    return mlp_pallas(speed, angle, kparams, e_const)


def timestep_embedding(ts, dim=EMB_DIM, max_period=10000):
    """Pure-JAX port of the PyTorch helper. ts: [B, n] -> [B, n*dim] (cos|sin)."""
    half = dim // 2
    freqs = jnp.exp(
        -math.log(max_period) * jnp.arange(half, dtype=jnp.float32) / half
    )
    args = ts[:, :, None].astype(jnp.float32) * freqs[None, None, :]
    emb = jnp.concatenate([jnp.cos(args), jnp.sin(args)], axis=-1)
    return emb.reshape(ts.shape[0], -1)


def mlp_forward_ref(speed, angle, params_f32):
    """Pure-JAX f32 reference (module semantics) for verification."""
    w1, b1, w2, b2, w3, b3 = params_f32
    x = jnp.concatenate([speed / 3.6, angle / 780.0], axis=1)
    emb = timestep_embedding(x, EMB_DIM)
    h1 = jax.nn.sigmoid(emb @ w1 + b1)
    h2 = jax.nn.sigmoid(h1 @ w2 + b2)
    return h2 @ w3 + b3


# ---------------------------------- Main --------------------------------------
if __name__ == "__main__":
    key = jax.random.PRNGKey(0)
    kp, ks, ka = jax.random.split(key, 3)

    params_f32 = init_params(kp)
    kparams = prepare_kernel_params(params_f32)
    e_const = make_embedding_constants()

    # L1 expects 320 = (10 * 32) features -> speed/angle are [B, 5] each.
    B = 2
    speed = jax.random.uniform(ks, (B, N_SPEED), jnp.float32, 0.0, 120.0)
    angle = jax.random.uniform(ka, (B, N_ANGLE), jnp.float32, -780.0, 780.0)

    out = mlp_forward(speed, angle, kparams, e_const)
    out = jax.block_until_ready(out)

    ref = mlp_forward_ref(speed, angle, params_f32)
    assert out.shape == (B, D_OUT)
    # bf16 matmul inputs are the only approximation left (tanh is exact, no
    # approximate reciprocal), so a tighter tolerance than before holds.
    assert jnp.allclose(out, ref, atol=2e-2, rtol=2e-2), "mismatch vs reference"

    print("KERNEL_OK")
</pallas_src>

<mosaic_0001>
module attributes {stable_mosaic.version = 11 : i64} {
  func.func @mlp_kernel(%arg0: i32, %arg1: memref<8x10xf32, #tpu.memory_space<vmem>>, %arg2: memref<10x160xf32, #tpu.memory_space<vmem>>, %arg3: memref<160x512xbf16, #tpu.memory_space<vmem>>, %arg4: memref<160x512xbf16, #tpu.memory_space<vmem>>, %arg5: memref<1x512xf32, #tpu.memory_space<vmem>>, %arg6: memref<512x128xbf16, #tpu.memory_space<vmem>>, %arg7: memref<1x128xf32, #tpu.memory_space<vmem>>, %arg8: memref<128x128xbf16, #tpu.memory_space<vmem>>, %arg9: memref<1x128xf32, #tpu.memory_space<vmem>>, %arg10: memref<8x128xf32, #tpu.memory_space<vmem>>) attributes {dimension_semantics = [#tpu.dimension_semantics<parallel>], iteration_bounds = array<i64: 1>, scalar_prefetch = 0 : i64, scratch_operands = 0 : i64, tpu.core_type = #tpu.core_type<tc>, window_params = [{transform_indices = @transform_0, window_bounds = array<i64: 8, 10>}, {pipeline_mode = #tpu.pipeline_mode<synchronous>, transform_indices = @transform_1, window_bounds = array<i64: 10, 160>}, {pipeline_mode = #tpu.pipeline_mode<synchronous>, transform_indices = @transform_2, window_bounds = array<i64: 160, 512>}, {pipeline_mode = #tpu.pipeline_mode<synchronous>, transform_indices = @transform_3, window_bounds = array<i64: 160, 512>}, {pipeline_mode = #tpu.pipeline_mode<synchronous>, transform_indices = @transform_4, window_bounds = array<i64: 1, 512>}, {pipeline_mode = #tpu.pipeline_mode<synchronous>, transform_indices = @transform_5, window_bounds = array<i64: 512, 128>}, {pipeline_mode = #tpu.pipeline_mode<synchronous>, transform_indices = @transform_6, window_bounds = array<i64: 1, 128>}, {pipeline_mode = #tpu.pipeline_mode<synchronous>, transform_indices = @transform_7, window_bounds = array<i64: 128, 128>}, {pipeline_mode = #tpu.pipeline_mode<synchronous>, transform_indices = @transform_8, window_bounds = array<i64: 1, 128>}, {transform_indices = @transform_9, window_bounds = array<i64: 8, 128>}]} {
    %c0 = arith.constant 0 : index
    %c0_0 = arith.constant 0 : index
    %0 = vector.load %arg1[%c0, %c0_0] : memref<8x10xf32, #tpu.memory_space<vmem>>, vector<8x10xf32>
    %c0_1 = arith.constant 0 : index
    %c0_2 = arith.constant 0 : index
    %1 = vector.load %arg2[%c0_1, %c0_2] : memref<10x160xf32, #tpu.memory_space<vmem>>, vector<10x160xf32>
    %cst = arith.constant dense<0.000000e+00> : vector<8x160xf32>
    %2 = tpu.matmul %0, %1, %cst {dimension_numbers = #tpu.dot_dimension_numbers<[1], [0], [0], [1], [0, 0, 1, 1], [], []>, precision = #tpu.contract_precision<fp32>} : vector<8x10xf32>, vector<10x160xf32>, vector<8x160xf32> -> vector<8x160xf32>
    %3 = math.cos %2 : vector<8x160xf32>
    %4 = arith.truncf %3 : vector<8x160xf32> to vector<8x160xbf16>
    %5 = math.sin %2 : vector<8x160xf32>
    %6 = arith.truncf %5 : vector<8x160xf32> to vector<8x160xbf16>
    %c0_3 = arith.constant 0 : index
    %c0_4 = arith.constant 0 : index
    %7 = vector.load %arg3[%c0_3, %c0_4] : memref<160x512xbf16, #tpu.memory_space<vmem>>, vector<160x512xbf16>
    %cst_5 = arith.constant dense<0.000000e+00> : vector<8x512xf32>
    %8 = tpu.matmul %4, %7, %cst_5 {dimension_numbers = #tpu.dot_dimension_numbers<[1], [0], [0], [1], [0, 0, 1, 1], [], []>} : vector<8x160xbf16>, vector<160x512xbf16>, vector<8x512xf32> -> vector<8x512xf32>
    %c0_6 = arith.constant 0 : index
    %c0_7 = arith.constant 0 : index
    %9 = vector.load %arg4[%c0_6, %c0_7] : memref<160x512xbf16, #tpu.memory_space<vmem>>, vector<160x512xbf16>
    %cst_8 = arith.constant dense<0.000000e+00> : vector<8x512xf32>
    %10 = tpu.matmul %6, %9, %cst_8 {dimension_numbers = #tpu.dot_dimension_numbers<[1], [0], [0], [1], [0, 0, 1, 1], [], []>} : vector<8x160xbf16>, vector<160x512xbf16>, vector<8x512xf32> -> vector<8x512xf32>
    %11 = arith.addf %8, %10 : vector<8x512xf32>
    %c0_9 = arith.constant 0 : index
    %c0_10 = arith.constant 0 : index
    %12 = vector.load %arg5[%c0_9, %c0_10] : memref<1x512xf32, #tpu.memory_space<vmem>>, vector<1x512xf32>
    %13 = vector.broadcast %12 : vector<1x512xf32> to vector<8x512xf32>
    %14 = arith.addf %11, %13 : vector<8x512xf32>
    %15 = math.tanh %14 : vector<8x512xf32>
    %16 = arith.truncf %15 : vector<8x512xf32> to vector<8x512xbf16>
    %c0_11 = arith.constant 0 : index
    %c0_12 = arith.constant 0 : index
    %17 = vector.load %arg6[%c0_11, %c0_12] : memref<512x128xbf16, #tpu.memory_space<vmem>>, vector<512x128xbf16>
    %cst_13 = arith.constant dense<0.000000e+00> : vector<8x128xf32>
    %18 = tpu.matmul %16, %17, %cst_13 {dimension_numbers = #tpu.dot_dimension_numbers<[1], [0], [0], [1], [0, 0, 1, 1], [], []>} : vector<8x512xbf16>, vector<512x128xbf16>, vector<8x128xf32> -> vector<8x128xf32>
    %c0_14 = arith.constant 0 : index
    %c0_15 = arith.constant 0 : index
    %19 = vector.load %arg7[%c0_14, %c0_15] : memref<1x128xf32, #tpu.memory_space<vmem>>, vector<1x128xf32>
    %20 = vector.broadcast %19 : vector<1x128xf32> to vector<8x128xf32>
    %21 = arith.addf %18, %20 : vector<8x128xf32>
    %22 = math.tanh %21 : vector<8x128xf32>
    %23 = arith.truncf %22 : vector<8x128xf32> to vector<8x128xbf16>
    %c0_16 = arith.constant 0 : index
    %c0_17 = arith.constant 0 : index
    %24 = vector.load %arg8[%c0_16, %c0_17] : memref<128x128xbf16, #tpu.memory_space<vmem>>, vector<128x128xbf16>
    %cst_18 = arith.constant dense<0.000000e+00> : vector<8x128xf32>
    %25 = tpu.matmul %23, %24, %cst_18 {dimension_numbers = #tpu.dot_dimension_numbers<[1], [0], [0], [1], [0, 0, 1, 1], [], []>} : vector<8x128xbf16>, vector<128x128xbf16>, vector<8x128xf32> -> vector<8x128xf32>
    %c0_19 = arith.constant 0 : index
    %c0_20 = arith.constant 0 : index
    %26 = vector.load %arg9[%c0_19, %c0_20] : memref<1x128xf32, #tpu.memory_space<vmem>>, vector<1x128xf32>
    %27 = vector.broadcast %26 : vector<1x128xf32> to vector<8x128xf32>
    %28 = arith.addf %25, %27 : vector<8x128xf32>
    %c0_21 = arith.constant 0 : index
    %c0_22 = arith.constant 0 : index
    %29 = vector.load %arg10[%c0_21, %c0_22] : memref<8x128xf32, #tpu.memory_space<vmem>>, vector<8x128xf32>
    tpu.vector_store %arg10[%c0_21, %c0_22], %28 {strides = array<i32>} : memref<8x128xf32, #tpu.memory_space<vmem>>, vector<8x128xf32>,
    return
  }
  func.func @transform_0(%arg0: i32) -> (i32, i32) {
    %c0_i32 = arith.constant 0 : i32
    %c0_i32_0 = arith.constant 0 : i32
    return %arg0, %c0_i32 : i32, i32
  }
  func.func @transform_1(%arg0: i32) -> (i32, i32) {
    %c0_i32 = arith.constant 0 : i32
    %c0_i32_0 = arith.constant 0 : i32
    %c0_i32_1 = arith.constant 0 : i32
    return %c0_i32, %c0_i32_0 : i32, i32
  }
  func.func @transform_2(%arg0: i32) -> (i32, i32) {
    %c0_i32 = arith.constant 0 : i32
    %c0_i32_0 = arith.constant 0 : i32
    %c0_i32_1 = arith.constant 0 : i32
    return %c0_i32, %c0_i32_0 : i32, i32
  }
  func.func @transform_3(%arg0: i32) -> (i32, i32) {
    %c0_i32 = arith.constant 0 : i32
    %c0_i32_0 = arith.constant 0 : i32
    %c0_i32_1 = arith.constant 0 : i32
    return %c0_i32, %c0_i32_0 : i32, i32
  }
  func.func @transform_4(%arg0: i32) -> (i32, i32) {
    %c0_i32 = arith.constant 0 : i32
    %c0_i32_0 = arith.constant 0 : i32
    %c0_i32_1 = arith.constant 0 : i32
    return %c0_i32, %c0_i32_0 : i32, i32
  }
  func.func @transform_5(%arg0: i32) -> (i32, i32) {
    %c0_i32 = arith.constant 0 : i32
    %c0_i32_0 = arith.constant 0 : i32
    %c0_i32_1 = arith.constant 0 : i32
    return %c0_i32, %c0_i32_0 : i32, i32
  }
  func.func @transform_6(%arg0: i32) -> (i32, i32) {
    %c0_i32 = arith.constant 0 : i32
    %c0_i32_0 = arith.constant 0 : i32
    %c0_i32_1 = arith.constant 0 : i32
    return %c0_i32, %c0_i32_0 : i32, i32
  }
  func.func @transform_7(%arg0: i32) -> (i32, i32) {
    %c0_i32 = arith.constant 0 : i32
    %c0_i32_0 = arith.constant 0 : i32
    %c0_i32_1 = arith.constant 0 : i32
    return %c0_i32, %c0_i32_0 : i32, i32
  }
  func.func @transform_8(%arg0: i32) -> (i32, i32) {
    %c0_i32 = arith.constant 0 : i32
    %c0_i32_0 = arith.constant 0 : i32
    %c0_i32_1 = arith.constant 0 : i32
    return %c0_i32, %c0_i32_0 : i32, i32
  }
  func.func @transform_9(%arg0: i32) -> (i32, i32) {
    %c0_i32 = arith.constant 0 : i32
    %c0_i32_0 = arith.constant 0 : i32
    return %arg0, %c0_i32 : i32, i32
  }
}

</mosaic_0001>

<llo_original>
// kernel: tpu_custom_call.1
$region0: #{tpu_custom_call.1}
  #allocation0 [shape = 'u32[]', space=smem, size = 0x4, offset = 0x4, fixed_abs, tag = 'smem constant byte address 0x4 - core index']
  #allocation1 [shape = 'u32[72,128]{1,0:T(1,128)}', space=vmem, size = 0x9000, scoped, tag = 'internal scratch']
  %s0 = inlined_call_operand.hbm [shape: f32[8,10], index: 0, kind: input, shape index: {}]
  %s1 = inlined_call_operand.hbm [shape: f32[10,160], index: 1, kind: input, shape index: {}]
  %s2 = inlined_call_operand.hbm [shape: bf16[160,512], index: 2, kind: input, shape index: {}]
  %s3 = inlined_call_operand.hbm [shape: bf16[160,512], index: 3, kind: input, shape index: {}]
  %s4 = inlined_call_operand.hbm [shape: f32[1,512], index: 4, kind: input, shape index: {}]
  %s5 = inlined_call_operand.hbm [shape: bf16[512,128], index: 5, kind: input, shape index: {}]
  %s6 = inlined_call_operand.vmem [shape: f32[1,128], index: 6, kind: input, shape index: {}]
  %s7 = inlined_call_operand.hbm [shape: bf16[128,128], index: 7, kind: input, shape index: {}]
  %s8 = inlined_call_operand.vmem [shape: f32[1,128], index: 8, kind: input, shape index: {}]
  %s9 = inlined_call_operand.hbm [shape: f32[8,128], index: 9, kind: output, shape index: {}]
  %s10 = sld [smem:[#allocation0]]
  $region74: #{tpu_custom_call.1} parent=0
    _
  %s12 = ssub.s32 1, %s10
  %s13 = scalar_select 0, %s12, %s10
  $region1: #{tpu_custom_call.1} parent=0
    #allocation2 [shape = 'u8[4096]{0}', space=vmem, size = 0x1000, scoped, tag = 'input window, operand 0, single buffered']
    #allocation3 [shape = 's32[1]{0}', space=sflag, size = 0x4, scoped, tag = 'scoped memory for tpu_custom_call.1']
    #allocation4 [shape = 's32[1]{0}', space=sflag, size = 0x4, scoped, tag = 'scoped memory for tpu_custom_call.1']
    #allocation5 [shape = 'u8[16384]{0}', space=vmem, size = 0x4000, scoped, tag = 'input window, operand 1, single buffered']
    #allocation6 [shape = 's32[1]{0}', space=sflag, size = 0x4, scoped, tag = 'scoped memory for tpu_custom_call.1']
    #allocation7 [shape = 'u8[163840]{0}', space=vmem, size = 0x28000, scoped, tag = 'input window, operand 2, single buffered']
    #allocation8 [shape = 'u8[163840]{0}', space=vmem, size = 0x28000, scoped, tag = 'input window, operand 3, single buffered']
    #allocation9 [shape = 's32[1]{0}', space=sflag, size = 0x4, scoped, tag = 'scoped memory for tpu_custom_call.1']
    #allocation10 [shape = 'u8[2048]{0}', space=vmem, size = 0x800, scoped, tag = 'input window, operand 4, single buffered']
    #allocation11 [shape = 'u8[131072]{0}', space=vmem, size = 0x20000, scoped, tag = 'input window, operand 5, single buffered']
    #allocation12 [shape = 's32[1]{0}', space=sflag, size = 0x4, scoped, tag = 'scoped memory for tpu_custom_call.1']
    #allocation13 [shape = 'u8[32768]{0}', space=vmem, size = 0x8000, scoped, tag = 'input window, operand 7, single buffered']
    #allocation14 [shape = 'u8[4096]{0}', space=vmem, size = 0x1000, scoped, tag = 'output window, operand 0, single buffered']
    %14 = vsyncpa [#allocation3], 0
    %15 = vsyncpa [#allocation6], 0
    %16 = vsyncpa [#allocation9], 0
    %17 = vsyncpa [#allocation12], 0
    %18 = vsyncpa [#allocation4], 0
    // Predicated region
    $region2: #{tpu_custom_call.1} parent=1 // pred_check
      _
    $region3: #{tpu_custom_call.1} parent=1 // pred_check_branch
      %20 = sbr.rel (0) target = $region5
    $region4: #{tpu_custom_call.1} parent=1 // pred_region
      %22 = vsyncadd [#allocation3], 0
      %s24 = sshll.u32 %s0, 4
      %s25 = int_to_ptr.hbm [resolvable:$true] %s24
      %s26 = sshll.u32 [#allocation2], 4
      %s27 = int_to_ptr.vmem [resolvable:$true] %s26
      %29 = dma.hbm_to_vmem [thread:$0]  %s25, 128, %s27, [#allocation3]
    $region5: #{tpu_custom_call.1} parent=1 // pred_fallthru
      _
    // Predicated region
    $region6: #{tpu_custom_call.1} parent=1 // pred_check
      _
    $region7: #{tpu_custom_call.1} parent=1 // pred_check_branch
      %31 = sbr.rel (0) target = $region9
    $region8: #{tpu_custom_call.1} parent=1 // pred_region
      %33 = vsyncadd [#allocation6], 0
      %s34 = sshll.u32 %s1, 4
      %s35 = int_to_ptr.hbm [resolvable:$true] %s34
      %s36 = sshll.u32 [#allocation5], 4
      %s37 = int_to_ptr.vmem [resolvable:$true] %s36
      %42 = dma.hbm_to_vmem [thread:$0]  %s35, 512, %s37, [#allocation6], 256, 256, 16
    $region9: #{tpu_custom_call.1} parent=1 // pred_fallthru
      _
    // Predicated region
    $region10: #{tpu_custom_call.1} parent=1 // pred_check
      _
    $region11: #{tpu_custom_call.1} parent=1 // pred_check_branch
      %44 = sbr.rel (0) target = $region13
    $region12: #{tpu_custom_call.1} parent=1 // pred_region
      %46 = vsyncadd [#allocation6], 0
      %s47 = sshll.u32 %s2, 4
      %s48 = int_to_ptr.hbm [resolvable:$true] %s47
      %s49 = sshll.u32 [#allocation7], 4
      %s50 = int_to_ptr.vmem [resolvable:$true] %s49
      %55 = dma.hbm_to_vmem [thread:$0]  %s48, 5120, %s50, [#allocation6], 256, 256, 16
    $region13: #{tpu_custom_call.1} parent=1 // pred_fallthru
      _
    // Predicated region
    $region14: #{tpu_custom_call.1} parent=1 // pred_check
      _
    $region15: #{tpu_custom_call.1} parent=1 // pred_check_branch
      %57 = sbr.rel (0) target = $region17
    $region16: #{tpu_custom_call.1} parent=1 // pred_region
      %59 = vsyncadd [#allocation9], 0
      %s60 = sshll.u32 %s3, 4
      %s61 = int_to_ptr.hbm [resolvable:$true] %s60
      %s62 = sshll.u32 [#allocation8], 4
      %s63 = int_to_ptr.vmem [resolvable:$true] %s62
      %68 = dma.hbm_to_vmem [thread:$0]  %s61, 5120, %s63, [#allocation9], 256, 256, 16
    $region17: #{tpu_custom_call.1} parent=1 // pred_fallthru
      _
    // Predicated region
    $region18: #{tpu_custom_call.1} parent=1 // pred_check
      _
    $region19: #{tpu_custom_call.1} parent=1 // pred_check_branch
      %70 = sbr.rel (0) target = $region21
    $region20: #{tpu_custom_call.1} parent=1 // pred_region
      %72 = vsyncadd [#allocation9], 0
      %s74 = sshll.u32 %s4, 4
      %s75 = int_to_ptr.hbm [resolvable:$true] %s74
      %s76 = sshll.u32 [#allocation10], 4
      %s77 = int_to_ptr.vmem [resolvable:$true] %s76
      %79 = dma.hbm_to_vmem [thread:$0]  %s75, 64, %s77, [#allocation9]
    $region21: #{tpu_custom_call.1} parent=1 // pred_fallthru
      _
    // Predicated region
    $region22: #{tpu_custom_call.1} parent=1 // pred_check
      _
    $region23: #{tpu_custom_call.1} parent=1 // pred_check_branch
      %81 = sbr.rel (0) target = $region25
    $region24: #{tpu_custom_call.1} parent=1 // pred_region
      %83 = vsyncadd [#allocation12], 0
      %s84 = sshll.u32 %s5, 4
      %s85 = int_to_ptr.hbm [resolvable:$true] %s84
      %s86 = sshll.u32 [#allocation11], 4
      %s87 = int_to_ptr.vmem [resolvable:$true] %s86
      %92 = dma.hbm_to_vmem [thread:$0]  %s85, 4096, %s87, [#allocation12], 64, 64, 4
    $region25: #{tpu_custom_call.1} parent=1 // pred_fallthru
      _
    // Predicated region
    $region26: #{tpu_custom_call.1} parent=1 // pred_check
      _
    $region27: #{tpu_custom_call.1} parent=1 // pred_check_branch
      %94 = sbr.rel (0) target = $region29
    $region28: #{tpu_custom_call.1} parent=1 // pred_region
      _
    $region29: #{tpu_custom_call.1} parent=1 // pred_fallthru
      _
    // Predicated region
    $region30: #{tpu_custom_call.1} parent=1 // pred_check
      _
    $region31: #{tpu_custom_call.1} parent=1 // pred_check_branch
      %96 = sbr.rel (0) target = $region33
    $region32: #{tpu_custom_call.1} parent=1 // pred_region
      %98 = vsyncadd [#allocation12], 0
      %s99 = sshll.u32 %s7, 4
      %s100 = int_to_ptr.hbm [resolvable:$true] %s99
      %s101 = sshll.u32 [#allocation13], 4
      %s102 = int_to_ptr.vmem [resolvable:$true] %s101
      %107 = dma.hbm_to_vmem [thread:$0]  %s100, 1024, %s102, [#allocation12], 64, 64, 4
    $region33: #{tpu_custom_call.1} parent=1 // pred_fallthru
      _
    // Predicated region
    $region34: #{tpu_custom_call.1} parent=1 // pred_check
      _
    $region35: #{tpu_custom_call.1} parent=1 // pred_check_branch
      %109 = sbr.rel (0) target = $region37
    $region36: #{tpu_custom_call.1} parent=1 // pred_region
      _
    $region37: #{tpu_custom_call.1} parent=1 // pred_fallthru
      _
    // Predicated region
    $region38: #{tpu_custom_call.1} parent=1 // pred_check
      _
    $region39: #{tpu_custom_call.1} parent=1 // pred_check_branch
      %111 = sbr.rel (0) target = $region41
    $region40: #{tpu_custom_call.1} parent=1 // pred_region
      %113 = dma.done [#allocation3], 128
    $region41: #{tpu_custom_call.1} parent=1 // pred_fallthru
      _
    // Predicated region
    $region42: #{tpu_custom_call.1} parent=1 // pred_check
      _
    $region43: #{tpu_custom_call.1} parent=1 // pred_check_branch
      %115 = sbr.rel (0) target = $region45
    $region44: #{tpu_custom_call.1} parent=1 // pred_region
      %117 = dma.done [#allocation6], 512
    $region45: #{tpu_custom_call.1} parent=1 // pred_fallthru
      _
    // Predicated region
    $region46: #{tpu_custom_call.1} parent=1 // pred_check
      _
    $region47: #{tpu_custom_call.1} parent=1 // pred_check_branch
      %119 = sbr.rel (0) target = $region49
    $region48: #{tpu_custom_call.1} parent=1 // pred_region
      %121 = dma.done [#allocation6], 5120
    $region49: #{tpu_custom_call.1} parent=1 // pred_fallthru
      _
    // Predicated region
    $region50: #{tpu_custom_call.1} parent=1 // pred_check
      _
    $region51: #{tpu_custom_call.1} parent=1 // pred_check_branch
      %123 = sbr.rel (0) target = $region53
    $region52: #{tpu_custom_call.1} parent=1 // pred_region
      %125 = dma.done [#allocation9], 5120
    $region53: #{tpu_custom_call.1} parent=1 // pred_fallthru
      _
    // Predicated region
    $region54: #{tpu_custom_call.1} parent=1 // pred_check
      _
    $region55: #{tpu_custom_call.1} parent=1 // pred_check_branch
      %127 = sbr.rel (0) target = $region57
    $region56: #{tpu_custom_call.1} parent=1 // pred_region
      %129 = dma.done [#allocation9], 64
    $region57: #{tpu_custom_call.1} parent=1 // pred_fallthru
      _
    // Predicated region
    $region58: #{tpu_custom_call.1} parent=1 // pred_check
      _
    $region59: #{tpu_custom_call.1} parent=1 // pred_check_branch
      %131 = sbr.rel (0) target = $region61
    $region60: #{tpu_custom_call.1} parent=1 // pred_region
      %133 = dma.done [#allocation12], 4096
    $region61: #{tpu_custom_call.1} parent=1 // pred_fallthru
      _
    // Predicated region
    $region62: #{tpu_custom_call.1} parent=1 // pred_check
      _
    $region63: #{tpu_custom_call.1} parent=1 // pred_check_branch
      %135 = sbr.rel (0) target = $region65
    $region64: #{tpu_custom_call.1} parent=1 // pred_region
      %137 = dma.done [#allocation12], 1024
    $region65: #{tpu_custom_call.1} parent=1 // pred_fallthru
      _
    %v139 = vld [vmem:[#allocation2] sm:$0xff]
    %v140 = vld [vmem:[#allocation5] sm:$0xff]
    %v141 = vld [vmem:[#allocation5 + $0x8] sm:$0xff]
    %v142 = vld [vmem:[#allocation5 + $0x10] sm:$0x3]
    %v143 = vld [vmem:[#allocation5 + $0x18] sm:$0x3]
    %vm144 = vcmask 80896
    %v146 = vsel %vm144, %v139, 0
    %vm148 = vcmask 1041408
    %v150 = vsel %vm148, %v142, 0
    %v153 = vsel %vm148, %v143, 0
    %155 = vmatpush.msra.mxu0 0.0
    %156 = vmatpush.msra.mxu0 0.0
    %157 = vmatpush.msra.mxu0 0.0
    %158 = vmatpush.msra.mxu0 0.0
    %159 = vmatpush.msra.mxu0 0.0
    %160 = vmatpush.msra.mxu0 0.0
    %161 = vmatpush.msra.mxu0 0.0
    %162 = vmatpush.msra.mxu0 0.0
    %163 = vmatpush.msra.mxu0 0.0
    %164 = vmatpush.msra.mxu0 0.0
    %165 = vmatpush.msra.mxu0 0.0
    %166 = vmatpush.msra.mxu0 0.0
    %167 = vmatpush.msra.mxu0 0.0
    %168 = vmatpush.msra.mxu0 0.0
    %v169 = vand.u32 %v150, 4294901760
    %170 = vmatpush.msra.mxu0 %v169
    %v171 = vand.u32 %v140, 4294901760
    %172 = vmatpush.msra.mxu0 %v171
    %v173 = vand.u32 %v146, 4294901760
    %v174 = vsub.f32 %v146, %v173
    %v175 = vand.u32 %v174, 4294901760
    %v176 = vsub.f32 %v174, %v175
    %v177 = vand.u32 %v176, 4294901760
    %178 = vmatmul.f32.gmra.mxu0 %v177
    %v179 = vpop.f32.mrf.mxu0
    %v180 = vadd.f32 0.0, %v179
    %181 = vdwg.mxu0
    %182 = vmatpush.msra.mxu0 0.0
    %183 = vmatpush.msra.mxu0 0.0
    %184 = vmatpush.msra.mxu0 0.0
    %185 = vmatpush.msra.mxu0 0.0
    %186 = vmatpush.msra.mxu0 0.0
    %187 = vmatpush.msra.mxu0 0.0
    %188 = vmatpush.msra.mxu0 0.0
    %189 = vmatpush.msra.mxu0 0.0
    %190 = vmatpush.msra.mxu0 0.0
    %191 = vmatpush.msra.mxu0 0.0
    %192 = vmatpush.msra.mxu0 0.0
    %193 = vmatpush.msra.mxu0 0.0
    %194 = vmatpush.msra.mxu0 0.0
    %195 = vmatpush.msra.mxu0 0.0
    %v196 = vand.u32 %v150, 4294901760
    %v197 = vsub.f32 %v150, %v196
    %v198 = vand.u32 %v197, 4294901760
    %v199 = vsub.f32 %v197, %v198
    %v200 = vand.u32 %v199, 4294901760
    %201 = vmatpush.msra.mxu0 %v200
    %v202 = vand.u32 %v140, 4294901760
    %v203 = vsub.f32 %v140, %v202
    %v204 = vand.u32 %v203, 4294901760
    %v205 = vsub.f32 %v203, %v204
    %v206 = vand.u32 %v205, 4294901760
    %207 = vmatpush.msra.mxu0 %v206
    %v208 = vand.u32 %v146, 4294901760
    %209 = vmatmul.f32.gmra.mxu0 %v208
    %v210 = vpop.f32.mrf.mxu0
    %v211 = vadd.f32 %v180, %v210
    %212 = vdwg.mxu0
    %213 = vmatpush.msra.mxu0 0.0
    %214 = vmatpush.msra.mxu0 0.0
    %215 = vmatpush.msra.mxu0 0.0
    %216 = vmatpush.msra.mxu0 0.0
    %217 = vmatpush.msra.mxu0 0.0
    %218 = vmatpush.msra.mxu0 0.0
    %219 = vmatpush.msra.mxu0 0.0
    %220 = vmatpush.msra.mxu0 0.0
    %221 = vmatpush.msra.mxu0 0.0
    %222 = vmatpush.msra.mxu0 0.0
    %223 = vmatpush.msra.mxu0 0.0
    %224 = vmatpush.msra.mxu0 0.0
    %225 = vmatpush.msra.mxu0 0.0
    %226 = vmatpush.msra.mxu0 0.0
    %v227 = vand.u32 %v150, 4294901760
    %v228 = vsub.f32 %v150, %v227
    %229 = vmatpush.msra.mxu0 %v228
    %v230 = vand.u32 %v140, 4294901760
    %v231 = vsub.f32 %v140, %v230
    %232 = vmatpush.msra.mxu0 %v231
    %v233 = vand.u32 %v146, 4294901760
    %v234 = vsub.f32 %v146, %v233
    %235 = vmatmul.f32.gmra.mxu0 %v234
    %v236 = vpop.f32.mrf.mxu0
    %v237 = vadd.f32 %v211, %v236
    %238 = vdwg.mxu0
    %239 = vmatpush.msra.mxu0 0.0
    %240 = vmatpush.msra.mxu0 0.0
    %241 = vmatpush.msra.mxu0 0.0
    %242 = vmatpush.msra.mxu0 0.0
    %243 = vmatpush.msra.mxu0 0.0
    %244 = vmatpush.msra.mxu0 0.0
    %245 = vmatpush.msra.mxu0 0.0
    %246 = vmatpush.msra.mxu0 0.0
    %247 = vmatpush.msra.mxu0 0.0
    %248 = vmatpush.msra.mxu0 0.0
    %249 = vmatpush.msra.mxu0 0.0
    %250 = vmatpush.msra.mxu0 0.0
    %251 = vmatpush.msra.mxu0 0.0
    %252 = vmatpush.msra.mxu0 0.0
    %v253 = vand.u32 %v150, 4294901760
    %254 = vmatpush.msra.mxu0 %v253
    %v255 = vand.u32 %v140, 4294901760
    %256 = vmatpush.msra.mxu0 %v255
    %v257 = vand.u32 %v146, 4294901760
    %v258 = vsub.f32 %v146, %v257
    %v259 = vand.u32 %v258, 4294901760
    %260 = vmatmul.f32.gmra.mxu0 %v259
    %v261 = vpop.f32.mrf.mxu0
    %v262 = vadd.f32 %v237, %v261
    %263 = vdwg.mxu0
    %264 = vmatpush.msra.mxu0 0.0
    %265 = vmatpush.msra.mxu0 0.0
    %266 = vmatpush.msra.mxu0 0.0
    %267 = vmatpush.msra.mxu0 0.0
    %268 = vmatpush.msra.mxu0 0.0
    %269 = vmatpush.msra.mxu0 0.0
    %270 = vmatpush.msra.mxu0 0.0
    %271 = vmatpush.msra.mxu0 0.0
    %272 = vmatpush.msra.mxu0 0.0
    %273 = vmatpush.msra.mxu0 0.0
    %274 = vmatpush.msra.mxu0 0.0
    %275 = vmatpush.msra.mxu0 0.0
    %276 = vmatpush.msra.mxu0 0.0
    %277 = vmatpush.msra.mxu0 0.0
    %v278 = vand.u32 %v150, 4294901760
    %v279 = vsub.f32 %v150, %v278
    %v280 = vand.u32 %v279, 4294901760
    %281 = vmatpush.msra.mxu0 %v280
    %v282 = vand.u32 %v140, 4294901760
    %v283 = vsub.f32 %v140, %v282
    %v284 = vand.u32 %v283, 4294901760
    %285 = vmatpush.msra.mxu0 %v284
    %v286 = vand.u32 %v146, 4294901760
    %287 = vmatmul.f32.gmra.mxu0 %v286
    %v288 = vpop.f32.mrf.mxu0
    %v289 = vadd.f32 %v262, %v288
    %290 = vdwg.mxu0
    %291 = vmatpush.msra.mxu0 0.0
    %292 = vmatpush.msra.mxu0 0.0
    %293 = vmatpush.msra.mxu0 0.0
    %294 = vmatpush.msra.mxu0 0.0
    %295 = vmatpush.msra.mxu0 0.0
    %296 = vmatpush.msra.mxu0 0.0
    %297 = vmatpush.msra.mxu0 0.0
    %298 = vmatpush.msra.mxu0 0.0
    %299 = vmatpush.msra.mxu0 0.0
    %300 = vmatpush.msra.mxu0 0.0
    %301 = vmatpush.msra.mxu0 0.0
    %302 = vmatpush.msra.mxu0 0.0
    %303 = vmatpush.msra.mxu0 0.0
    %304 = vmatpush.msra.mxu0 0.0
    %v305 = vand.u32 %v150, 4294901760
    %306 = vmatpush.msra.mxu0 %v305
    %v307 = vand.u32 %v140, 4294901760
    %308 = vmatpush.msra.mxu0 %v307
    %v309 = vand.u32 %v146, 4294901760
    %310 = vmatmul.f32.gmra.mxu0 %v309
    %v311 = vpop.f32.mrf.mxu0
    %v312 = vadd.f32 %v289, %v311
    %313 = vdwg.mxu0
    %314 = vmatpush.msra.mxu0 0.0
    %315 = vmatpush.msra.mxu0 0.0
    %316 = vmatpush.msra.mxu0 0.0
    %317 = vmatpush.msra.mxu0 0.0
    %318 = vmatpush.msra.mxu0 0.0
    %319 = vmatpush.msra.mxu0 0.0
    %320 = vmatpush.msra.mxu0 0.0
    %321 = vmatpush.msra.mxu0 0.0
    %322 = vmatpush.msra.mxu0 0.0
    %323 = vmatpush.msra.mxu0 0.0
    %324 = vmatpush.msra.mxu0 0.0
    %325 = vmatpush.msra.mxu0 0.0
    %326 = vmatpush.msra.mxu0 0.0
    %327 = vmatpush.msra.mxu0 0.0
    %v328 = vand.u32 %v153, 4294901760
    %329 = vmatpush.msra.mxu0 %v328
    %v330 = vand.u32 %v141, 4294901760
    %331 = vmatpush.msra.mxu0 %v330
    %v332 = vand.u32 %v146, 4294901760
    %v333 = vsub.f32 %v146, %v332
    %v334 = vand.u32 %v333, 4294901760
    %v335 = vsub.f32 %v333, %v334
    %v336 = vand.u32 %v335, 4294901760
    %337 = vmatmul.f32.gmra.mxu0 %v336
    %v338 = vpop.f32.mrf.mxu0
    %v339 = vadd.f32 0.0, %v338
    %340 = vdwg.mxu0
    %341 = vmatpush.msra.mxu0 0.0
    %342 = vmatpush.msra.mxu0 0.0
    %343 = vmatpush.msra.mxu0 0.0
    %344 = vmatpush.msra.mxu0 0.0
    %345 = vmatpush.msra.mxu0 0.0
    %346 = vmatpush.msra.mxu0 0.0
    %347 = vmatpush.msra.mxu0 0.0
    %348 = vmatpush.msra.mxu0 0.0
    %349 = vmatpush.msra.mxu0 0.0
    %350 = vmatpush.msra.mxu0 0.0
    %351 = vmatpush.msra.mxu0 0.0
    %352 = vmatpush.msra.mxu0 0.0
    %353 = vmatpush.msra.mxu0 0.0
    %354 = vmatpush.msra.mxu0 0.0
    %v355 = vand.u32 %v153, 4294901760
    %v356 = vsub.f32 %v153, %v355
    %v357 = vand.u32 %v356, 4294901760
    %v358 = vsub.f32 %v356, %v357
    %v359 = vand.u32 %v358, 4294901760
    %360 = vmatpush.msra.mxu0 %v359
    %v361 = vand.u32 %v141, 4294901760
    %v362 = vsub.f32 %v141, %v361
    %v363 = vand.u32 %v362, 4294901760
    %v364 = vsub.f32 %v362, %v363
    %v365 = vand.u32 %v364, 4294901760
    %366 = vmatpush.msra.mxu0 %v365
    %v367 = vand.u32 %v146, 4294901760
    %368 = vmatmul.f32.gmra.mxu0 %v367
    %v369 = vpop.f32.mrf.mxu0
    %v370 = vadd.f32 %v339, %v369
    %371 = vdwg.mxu0
    %372 = vmatpush.msra.mxu0 0.0
    %373 = vmatpush.msra.mxu0 0.0
    %374 = vmatpush.msra.mxu0 0.0
    %375 = vmatpush.msra.mxu0 0.0
    %376 = vmatpush.msra.mxu0 0.0
    %377 = vmatpush.msra.mxu0 0.0
    %378 = vmatpush.msra.mxu0 0.0
    %379 = vmatpush.msra.mxu0 0.0
    %380 = vmatpush.msra.mxu0 0.0
    %381 = vmatpush.msra.mxu0 0.0
    %382 = vmatpush.msra.mxu0 0.0
    %383 = vmatpush.msra.mxu0 0.0
    %384 = vmatpush.msra.mxu0 0.0
    %385 = vmatpush.msra.mxu0 0.0
    %v386 = vand.u32 %v153, 4294901760
    %v387 = vsub.f32 %v153, %v386
    %388 = vmatpush.msra.mxu0 %v387
    %v389 = vand.u32 %v141, 4294901760
    %v390 = vsub.f32 %v141, %v389
    %391 = vmatpush.msra.mxu0 %v390
    %v392 = vand.u32 %v146, 4294901760
    %v393 = vsub.f32 %v146, %v392
    %394 = vmatmul.f32.gmra.mxu0 %v393
    %v395 = vpop.f32.mrf.mxu0
    %v396 = vadd.f32 %v370, %v395
    %397 = vdwg.mxu0
    %398 = vmatpush.msra.mxu0 0.0
    %399 = vmatpush.msra.mxu0 0.0
    %400 = vmatpush.msra.mxu0 0.0
    %401 = vmatpush.msra.mxu0 0.0
    %402 = vmatpush.msra.mxu0 0.0
    %403 = vmatpush.msra.mxu0 0.0
    %404 = vmatpush.msra.mxu0 0.0
    %405 = vmatpush.msra.mxu0 0.0
    %406 = vmatpush.msra.mxu0 0.0
    %407 = vmatpush.msra.mxu0 0.0
    %408 = vmatpush.msra.mxu0 0.0
    %409 = vmatpush.msra.mxu0 0.0
    %410 = vmatpush.msra.mxu0 0.0
    %411 = vmatpush.msra.mxu0 0.0
    %v412 = vand.u32 %v153, 4294901760
    %413 = vmatpush.msra.mxu0 %v412
    %v414 = vand.u32 %v141, 4294901760
    %415 = vmatpush.msra.mxu0 %v414
    %v416 = vand.u32 %v146, 4294901760
    %v417 = vsub.f32 %v146, %v416
    %v418 = vand.u32 %v417, 4294901760
    %419 = vmatmul.f32.gmra.mxu0 %v418
    %v420 = vpop.f32.mrf.mxu0
    %v421 = vadd.f32 %v396, %v420
    %422 = vdwg.mxu0
    %423 = vmatpush.msra.mxu0 0.0
    %424 = vmatpush.msra.mxu0 0.0
    %425 = vmatpush.msra.mxu0 0.0
    %426 = vmatpush.msra.mxu0 0.0
    %427 = vmatpush.msra.mxu0 0.0
    %428 = vmatpush.msra.mxu0 0.0
    %429 = vmatpush.msra.mxu0 0.0
    %430 = vmatpush.msra.mxu0 0.0
    %431 = vmatpush.msra.mxu0 0.0
    %432 = vmatpush.msra.mxu0 0.0
    %433 = vmatpush.msra.mxu0 0.0
    %434 = vmatpush.msra.mxu0 0.0
    %435 = vmatpush.msra.mxu0 0.0
    %436 = vmatpush.msra.mxu0 0.0
    %v437 = vand.u32 %v153, 4294901760
    %v438 = vsub.f32 %v153, %v437
    %v439 = vand.u32 %v438, 4294901760
    %440 = vmatpush.msra.mxu0 %v439
    %v441 = vand.u32 %v141, 4294901760
    %v442 = vsub.f32 %v141, %v441
    %v443 = vand.u32 %v442, 4294901760
    %444 = vmatpush.msra.mxu0 %v443
    %v445 = vand.u32 %v146, 4294901760
    %446 = vmatmul.f32.gmra.mxu0 %v445
    %v447 = vpop.f32.mrf.mxu0
    %v448 = vadd.f32 %v421, %v447
    %449 = vdwg.mxu0
    %450 = vmatpush.msra.mxu0 0.0
    %451 = vmatpush.msra.mxu0 0.0
    %452 = vmatpush.msra.mxu0 0.0
    %453 = vmatpush.msra.mxu0 0.0
    %454 = vmatpush.msra.mxu0 0.0
    %455 = vmatpush.msra.mxu0 0.0
    %456 = vmatpush.msra.mxu0 0.0
    %457 = vmatpush.msra.mxu0 0.0
    %458 = vmatpush.msra.mxu0 0.0
    %459 = vmatpush.msra.mxu0 0.0
    %460 = vmatpush.msra.mxu0 0.0
    %461 = vmatpush.msra.mxu0 0.0
    %462 = vmatpush.msra.mxu0 0.0
    %463 = vmatpush.msra.mxu0 0.0
    %v464 = vand.u32 %v153, 4294901760
    %465 = vmatpush.msra.mxu0 %v464
    %v466 = vand.u32 %v141, 4294901760
    %467 = vmatpush.msra.mxu0 %v466
    %v468 = vand.u32 %v146, 4294901760
    %469 = vmatmul.f32.gmra.mxu0 %v468
    %v470 = vpop.f32.mrf.mxu0
    %v471 = vadd.f32 %v448, %v470
    %472 = vdwg.mxu0
    %v473 = vand.u32 2147483647, %v312
    %vm474 = vcmp.le.f32.partialorder %v473, 0.7853982
    %vm475 = vcmp.lt.s32.totalorder %v312, 0
    %v476 = vand.u32 %v312, 2139095040
    %v477 = vshrl.u32 %v476, 23
    %v478 = vsub.s32 %v477, 127
    %v479 = vand.u32 2147483647, %v312
    %v480 = vand.u32 %v479, 8388607
    %v481 = vor.u32 %v480, 8388608
    %v482 = vsub.s32 0, %v481
    %v483 = vadd.s32 %v478, 1
    %vm484 = vcmp.gt.s32.totalorder %v483, 0
    %v485 = vsel %vm484, %v483, 0
    %v486 = vshrl.u32 %v485, 5
    %v487 = vand.u32 %v485, 31
    %v488 = vsub.s32 32, %v487
    %v489 = vshrl.u32 683565275, %v488
    %v490 = vshll.u32 683565275, %v487
    %v491 = vshrl.u32 2475754826, %v488
    %v492 = vor.u32 %v490, %v491
    %v493 = vshll.u32 2475754826, %v487
    %v494 = vshrl.u32 2131351028, %v488
    %v495 = vor.u32 %v493, %v494
    %v496 = vshll.u32 2131351028, %v487
    %v497 = vshrl.u32 2102212464, %v488
    %v498 = vor.u32 %v496, %v497
    %v499 = vshll.u32 2102212464, %v487
    %v500 = vshrl.u32 920167782, %v488
    %v501 = vor.u32 %v499, %v500
    %v502 = vshll.u32 920167782, %v487
    %v503 = vshrl.u32 1326507024, %v488
    %v504 = vor.u32 %v502, %v503
    %vm505 = vcmp.lt.s32.totalorder %v486, 1
    %vm506 = vcmp.lt.s32.totalorder %v486, 2
    %vm507 = vcmp.lt.s32.totalorder %v486, 3
    %vm508 = vcmp.lt.s32.totalorder %v486, 4
    %v509 = vsel %vm505, %v489, %v492
    %v510 = vsel %vm508, %v498, 2102212464
    %v511 = vsel %vm507, %v495, %v510
    %v512 = vsel %vm506, %v509, %v511
    %v513 = vsel %vm505, %v492, %v495
    %v514 = vsel %vm508, %v501, 920167782
    %v515 = vsel %vm507, %v498, %v514
    %v516 = vsel %vm506, %v513, %v515
    %v517 = vsel %vm505, %v495, %v498
    %v518 = vsel %vm508, %v504, 1326507024
    %v519 = vsel %vm507, %v501, %v518
    %v520 = vsel %vm506, %v517, %v519
    %v521 = vshll.u32 %v481, 8
    %v522 = vand.u32 %v521, 65535
    %v523 = vshrl.u32 %v521, 16
    %v524 = vand.u32 %v520, 65535
    %v525 = vshrl.u32 %v520, 16
    %v526 = vmul.u32 %v522, %v524
    %v527 = vmul.u32 %v522, %v525
    %v528 = vmul.u32 %v523, %v524
    %v529 = vmul.u32 %v523, %v525
    %v530 = vshll.u32 %v527, 16
    %v531 = vshrl.u32 %v527, 16
    %v532 = vshll.u32 %v528, 16
    %v533 = vshrl.u32 %v528, 16
    %vm534 = vc.u32 %v526, %v530
    %v535 = vsel %vm534, 1, 0
    %v536 = vadd.s32 %v526, %v530
    %v537 = vadd.s32 %v529, %v535
    %vm538 = vc.u32 %v536, %v532
    %v539 = vsel %vm538, 1, 0
    %v540 = vadd.s32 %v536, %v532
    %v541 = vadd.s32 %v537, %v539
    %v542 = vadd.s32 %v541, %v531
    %v543 = vadd.s32 %v542, %v533
    %v544 = vand.u32 %v521, 65535
    %v545 = vshrl.u32 %v521, 16
    %v546 = vand.u32 %v516, 65535
    %v547 = vshrl.u32 %v516, 16
    %v548 = vmul.u32 %v544, %v546
    %v549 = vmul.u32 %v544, %v547
    %v550 = vmul.u32 %v545, %v546
    %v551 = vmul.u32 %v545, %v547
    %v552 = vshll.u32 %v549, 16
    %v553 = vshrl.u32 %v549, 16
    %v554 = vshll.u32 %v550, 16
    %v555 = vshrl.u32 %v550, 16
    %vm556 = vc.u32 %v548, %v552
    %v557 = vsel %vm556, 1, 0
    %v558 = vadd.s32 %v548, %v552
    %v559 = vadd.s32 %v551, %v557
    %vm560 = vc.u32 %v558, %v554
    %v561 = vsel %vm560, 1, 0
    %v562 = vadd.s32 %v558, %v554
    %v563 = vadd.s32 %v559, %v561
    %v564 = vadd.s32 %v563, %v553
    %v565 = vadd.s32 %v564, %v555
    %v566 = vmul.u32 %v521, %v512
    %v567 = vadd.s32 %v543, %v562
    %vm568 = vc.u32 %v543, %v562
    %v569 = vadd.s32 %v565, 1
    %v570 = vsel %vm568, %v569, %v565
    %v571 = vadd.s32 %v566, %v570
    %v572 = vadd.s32 %v571, 536870912
    %v573 = vshrl.u32 %v572, 30
    %v574 = vshll.u32 %v573, 30
    %v575 = vsub.s32 %v571, %v574
    %vm576 = vcmp.lt.s32.totalorder %v575, 0
    %v577 = vsub.s32 0, %v575
    %v578 = vsel %vm576, %v577, %v575
    %v579 = vclz %v578
    %v580 = vsub.s32 %v579, 2
    %vm581 = vcmp.gt.s32.totalorder 0, %v580
    %v582 = vsel %vm581, 0, %v580
    %v583 = vsub.s32 32, %v582
    %v584 = vshll.u32 %v575, %v582
    %v585 = vshrl.u32 %v567, %v583
    %v586 = vor.u32 %v584, %v585
    %v587 = vsub.s32 4294967266, %v582
    %v588 = vadd.s32 %v587, 127
    %v589 = vshll.u32 %v588, 23
    %v590 = vor.u32 4788187, %v589
    %v591 = vand.u32 2147483647, %v590
    %v593 = vcvt.s32.f32 %v586
    %v594 = vmul.f32 %v593, %v591
    %v595 = vxor.u32 %v594, 2147483648
    %v596 = vsel %vm475, %v595, %v594
    %v597 = vsub.s32 4, %v573
    %v598 = vsel %vm475, %v597, %v573
    %v599 = vsel %vm474, %v312, %v596
    %v600 = vsel %vm474, 0, %v598
    %v601 = vmul.f32 %v599, %v599
    %v602 = vmul.f32 %v601, -0.001358992
    %v603 = vadd.f32 %v602, 0.041655596
    %v604 = vmul.f32 %v601, %v603
    %v605 = vadd.f32 %v604, -0.4999988
    %v606 = vmul.f32 %v601, %v605
    %v607 = vadd.f32 1.0, %v606
    %v608 = vmul.f32 %v599, %v599
    %v609 = vmul.f32 %v608, -0.00019511016
    %v610 = vadd.f32 %v609, 0.008332121
    %v611 = vmul.f32 %v608, %v610
    %v612 = vadd.f32 %v611, -0.16666654
    %v613 = vmul.f32 %v608, %v612
    %v614 = vadd.f32 %v613, 1.0
    %v615 = vmul.f32 %v614, %v599
    %vm616 = vweird.f32 %v312
    %v617 = vand.u32 %v600, 3
    %vm618 = vcmp.lt.s32.totalorder %v617, 2
    %vm619 = vcmp.eq.s32.totalorder %v617, 0
    %v620 = vxor.u32 %v615, 2147483648
    %v621 = vsel %vm619, %v607, %v620
    %vm622 = vcmp.eq.s32.totalorder %v617, 2
    %v623 = vxor.u32 %v607, 2147483648
    %v624 = vsel %vm622, %v623, %v615
    %v625 = vsel %vm618, %v621, %v624
    %v626 = vsel %vm616, nan, %v625
    %v627 = vand.u32 2147483647, %v471
    %vm628 = vcmp.le.f32.partialorder %v627, 0.7853982
    %vm629 = vcmp.lt.s32.totalorder %v471, 0
    %v630 = vand.u32 %v471, 2139095040
    %v631 = vshrl.u32 %v630, 23
    %v632 = vsub.s32 %v631, 127
    %v633 = vand.u32 2147483647, %v471
    %v634 = vand.u32 %v633, 8388607
    %v635 = vor.u32 %v634, 8388608
    %v636 = vsub.s32 0, %v635
    %v637 = vadd.s32 %v632, 1
    %vm638 = vcmp.gt.s32.totalorder %v637, 0
    %v639 = vsel %vm638, %v637, 0
    %v640 = vshrl.u32 %v639, 5
    %v641 = vand.u32 %v639, 31
    %v642 = vsub.s32 32, %v641
    %v643 = vshrl.u32 683565275, %v642
    %v644 = vshll.u32 683565275, %v641
    %v645 = vshrl.u32 2475754826, %v642
    %v646 = vor.u32 %v644, %v645
    %v647 = vshll.u32 2475754826, %v641
    %v648 = vshrl.u32 2131351028, %v642
    %v649 = vor.u32 %v647, %v648
    %v650 = vshll.u32 2131351028, %v641
    %v651 = vshrl.u32 2102212464, %v642
    %v652 = vor.u32 %v650, %v651
    %v653 = vshll.u32 2102212464, %v641
    %v654 = vshrl.u32 920167782, %v642
    %v655 = vor.u32 %v653, %v654
    %v656 = vshll.u32 920167782, %v641
    %v657 = vshrl.u32 1326507024, %v642
    %v658 = vor.u32 %v656, %v657
    %vm659 = vcmp.lt.s32.totalorder %v640, 1
    %vm660 = vcmp.lt.s32.totalorder %v640, 2
    %vm661 = vcmp.lt.s32.totalorder %v640, 3
    %vm662 = vcmp.lt.s32.totalorder %v640, 4
    %v663 = vsel %vm659, %v643, %v646
    %v664 = vsel %vm662, %v652, 2102212464
    %v665 = vsel %vm661, %v649, %v664
    %v666 = vsel %vm660, %v663, %v665
    %v667 = vsel %vm659, %v646, %v649
    %v668 = vsel %vm662, %v655, 920167782
    %v669 = vsel %vm661, %v652, %v668
    %v670 = vsel %vm660, %v667, %v669
    %v671 = vsel %vm659, %v649, %v652
    %v672 = vsel %vm662, %v658, 1326507024
    %v673 = vsel %vm661, %v655, %v672
    %v674 = vsel %vm660, %v671, %v673
    %v675 = vshll.u32 %v635, 8
    %v676 = vand.u32 %v675, 65535
    %v677 = vshrl.u32 %v675, 16
    %v678 = vand.u32 %v674, 65535
    %v679 = vshrl.u32 %v674, 16
    %v680 = vmul.u32 %v676, %v678
    %v681 = vmul.u32 %v676, %v679
    %v682 = vmul.u32 %v677, %v678
    %v683 = vmul.u32 %v677, %v679
    %v684 = vshll.u32 %v681, 16
    %v685 = vshrl.u32 %v681, 16
    %v686 = vshll.u32 %v682, 16
    %v687 = vshrl.u32 %v682, 16
    %vm688 = vc.u32 %v680, %v684
    %v689 = vsel %vm688, 1, 0
    %v690 = vadd.s32 %v680, %v684
    %v691 = vadd.s32 %v683, %v689
    %vm692 = vc.u32 %v690, %v686
    %v693 = vsel %vm692, 1, 0
    %v694 = vadd.s32 %v690, %v686
    %v695 = vadd.s32 %v691, %v693
    %v696 = vadd.s32 %v695, %v685
    %v697 = vadd.s32 %v696, %v687
    %v698 = vand.u32 %v675, 65535
    %v699 = vshrl.u32 %v675, 16
    %v700 = vand.u32 %v670, 65535
    %v701 = vshrl.u32 %v670, 16
    %v702 = vmul.u32 %v698, %v700
    %v703 = vmul.u32 %v698, %v701
    %v704 = vmul.u32 %v699, %v700
    %v705 = vmul.u32 %v699, %v701
    %v706 = vshll.u32 %v703, 16
    %v707 = vshrl.u32 %v703, 16
    %v708 = vshll.u32 %v704, 16
    %v709 = vshrl.u32 %v704, 16
    %vm710 = vc.u32 %v702, %v706
    %v711 = vsel %vm710, 1, 0
    %v712 = vadd.s32 %v702, %v706
    %v713 = vadd.s32 %v705, %v711
    %vm714 = vc.u32 %v712, %v708
    %v715 = vsel %vm714, 1, 0
    %v716 = vadd.s32 %v712, %v708
    %v717 = vadd.s32 %v713, %v715
    %v718 = vadd.s32 %v717, %v707
    %v719 = vadd.s32 %v718, %v709
    %v720 = vmul.u32 %v675, %v666
    %v721 = vadd.s32 %v697, %v716
    %vm722 = vc.u32 %v697, %v716
    %v723 = vadd.s32 %v719, 1
    %v724 = vsel %vm722, %v723, %v719
    %v725 = vadd.s32 %v720, %v724
    %v726 = vadd.s32 %v725, 536870912
    %v727 = vshrl.u32 %v726, 30
    %v728 = vshll.u32 %v727, 30
    %v729 = vsub.s32 %v725, %v728
    %vm730 = vcmp.lt.s32.totalorder %v729, 0
    %v731 = vsub.s32 0, %v729
    %v732 = vsel %vm730, %v731, %v729
    %v733 = vclz %v732
    %v734 = vsub.s32 %v733, 2
    %vm735 = vcmp.gt.s32.totalorder 0, %v734
    %v736 = vsel %vm735, 0, %v734
    %v737 = vsub.s32 32, %v736
    %v738 = vshll.u32 %v729, %v736
    %v739 = vshrl.u32 %v721, %v737
    %v740 = vor.u32 %v738, %v739
    %v741 = vsub.s32 4294967266, %v736
    %v742 = vadd.s32 %v741, 127
    %v743 = vshll.u32 %v742, 23
    %v744 = vor.u32 4788187, %v743
    %v745 = vand.u32 2147483647, %v744
    %v747 = vcvt.s32.f32 %v740
    %v748 = vmul.f32 %v747, %v745
    %v749 = vxor.u32 %v748, 2147483648
    %v750 = vsel %vm629, %v749, %v748
    %v751 = vsub.s32 4, %v727
    %v752 = vsel %vm629, %v751, %v727
    %v753 = vsel %vm628, %v471, %v750
    %v754 = vsel %vm628, 0, %v752
    %v755 = vmul.f32 %v753, %v753
    %v756 = vmul.f32 %v755, -0.001358992
    %v757 = vadd.f32 %v756, 0.041655596
    %v758 = vmul.f32 %v755, %v757
    %v759 = vadd.f32 %v758, -0.4999988
    %v760 = vmul.f32 %v755, %v759
    %v761 = vadd.f32 1.0, %v760
    %v762 = vmul.f32 %v753, %v753
    %v763 = vmul.f32 %v762, -0.00019511016
    %v764 = vadd.f32 %v763, 0.008332121
    %v765 = vmul.f32 %v762, %v764
    %v766 = vadd.f32 %v765, -0.16666654
    %v767 = vmul.f32 %v762, %v766
    %v768 = vadd.f32 %v767, 1.0
    %v769 = vmul.f32 %v768, %v753
    %vm770 = vweird.f32 %v471
    %v771 = vand.u32 %v754, 3
    %vm772 = vcmp.lt.s32.totalorder %v771, 2
    %vm773 = vcmp.eq.s32.totalorder %v771, 0
    %v774 = vxor.u32 %v769, 2147483648
    %v775 = vsel %vm773, %v761, %v774
    %vm776 = vcmp.eq.s32.totalorder %v771, 2
    %v777 = vxor.u32 %v761, 2147483648
    %v778 = vsel %vm776, %v777, %v769
    %v779 = vsel %vm772, %v775, %v778
    %v780 = vsel %vm770, nan, %v779
    %v781 = vpack.c.bf16 %v626, %v626
    %v782 = vpack.c.bf16 %v780, %v780
    %v783 = vand.u32 2147483647, %v312
    %vm784 = vcmp.le.f32.partialorder %v783, 0.7853982
    %vm785 = vcmp.lt.s32.totalorder %v312, 0
    %v786 = vand.u32 %v312, 2139095040
    %v787 = vshrl.u32 %v786, 23
    %v788 = vsub.s32 %v787, 127
    %v789 = vand.u32 2147483647, %v312
    %v790 = vand.u32 %v789, 8388607
    %v791 = vor.u32 %v790, 8388608
    %v792 = vsub.s32 0, %v791
    %v793 = vadd.s32 %v788, 1
    %vm794 = vcmp.gt.s32.totalorder %v793, 0
    %v795 = vsel %vm794, %v793, 0
    %v796 = vshrl.u32 %v795, 5
    %v797 = vand.u32 %v795, 31
    %v798 = vsub.s32 32, %v797
    %v799 = vshrl.u32 683565275, %v798
    %v800 = vshll.u32 683565275, %v797
    %v801 = vshrl.u32 2475754826, %v798
    %v802 = vor.u32 %v800, %v801
    %v803 = vshll.u32 2475754826, %v797
    %v804 = vshrl.u32 2131351028, %v798
    %v805 = vor.u32 %v803, %v804
    %v806 = vshll.u32 2131351028, %v797
    %v807 = vshrl.u32 2102212464, %v798
    %v808 = vor.u32 %v806, %v807
    %v809 = vshll.u32 2102212464, %v797
    %v810 = vshrl.u32 920167782, %v798
    %v811 = vor.u32 %v809, %v810
    %v812 = vshll.u32 920167782, %v797
    %v813 = vshrl.u32 1326507024, %v798
    %v814 = vor.u32 %v812, %v813
    %vm815 = vcmp.lt.s32.totalorder %v796, 1
    %vm816 = vcmp.lt.s32.totalorder %v796, 2
    %vm817 = vcmp.lt.s32.totalorder %v796, 3
    %vm818 = vcmp.lt.s32.totalorder %v796, 4
    %v819 = vsel %vm815, %v799, %v802
    %v820 = vsel %vm818, %v808, 2102212464
    %v821 = vsel %vm817, %v805, %v820
    %v822 = vsel %vm816, %v819, %v821
    %v823 = vsel %vm815, %v802, %v805
    %v824 = vsel %vm818, %v811, 920167782
    %v825 = vsel %vm817, %v808, %v824
    %v826 = vsel %vm816, %v823, %v825
    %v827 = vsel %vm815, %v805, %v808
    %v828 = vsel %vm818, %v814, 1326507024
    %v829 = vsel %vm817, %v811, %v828
    %v830 = vsel %vm816, %v827, %v829
    %v831 = vshll.u32 %v791, 8
    %v832 = vand.u32 %v831, 65535
    %v833 = vshrl.u32 %v831, 16
    %v834 = vand.u32 %v830, 65535
    %v835 = vshrl.u32 %v830, 16
    %v836 = vmul.u32 %v832, %v834
    %v837 = vmul.u32 %v832, %v835
    %v838 = vmul.u32 %v833, %v834
    %v839 = vmul.u32 %v833, %v835
    %v840 = vshll.u32 %v837, 16
    %v841 = vshrl.u32 %v837, 16
    %v842 = vshll.u32 %v838, 16
    %v843 = vshrl.u32 %v838, 16
    %vm844 = vc.u32 %v836, %v840
    %v845 = vsel %vm844, 1, 0
    %v846 = vadd.s32 %v836, %v840
    %v847 = vadd.s32 %v839, %v845
    %vm848 = vc.u32 %v846, %v842
    %v849 = vsel %vm848, 1, 0
    %v850 = vadd.s32 %v846, %v842
    %v851 = vadd.s32 %v847, %v849
    %v852 = vadd.s32 %v851, %v841
    %v853 = vadd.s32 %v852, %v843
    %v854 = vand.u32 %v831, 65535
    %v855 = vshrl.u32 %v831, 16
    %v856 = vand.u32 %v826, 65535
    %v857 = vshrl.u32 %v826, 16
    %v858 = vmul.u32 %v854, %v856
    %v859 = vmul.u32 %v854, %v857
    %v860 = vmul.u32 %v855, %v856
    %v861 = vmul.u32 %v855, %v857
    %v862 = vshll.u32 %v859, 16
    %v863 = vshrl.u32 %v859, 16
    %v864 = vshll.u32 %v860, 16
    %v865 = vshrl.u32 %v860, 16
    %vm866 = vc.u32 %v858, %v862
    %v867 = vsel %vm866, 1, 0
    %v868 = vadd.s32 %v858, %v862
    %v869 = vadd.s32 %v861, %v867
    %vm870 = vc.u32 %v868, %v864
    %v871 = vsel %vm870, 1, 0
    %v872 = vadd.s32 %v868, %v864
    %v873 = vadd.s32 %v869, %v871
    %v874 = vadd.s32 %v873, %v863
    %v875 = vadd.s32 %v874, %v865
    %v876 = vmul.u32 %v831, %v822
    %v877 = vadd.s32 %v853, %v872
    %vm878 = vc.u32 %v853, %v872
    %v879 = vadd.s32 %v875, 1
    %v880 = vsel %vm878, %v879, %v875
    %v881 = vadd.s32 %v876, %v880
    %v882 = vadd.s32 %v881, 536870912
    %v883 = vshrl.u32 %v882, 30
    %v884 = vshll.u32 %v883, 30
    %v885 = vsub.s32 %v881, %v884
    %vm886 = vcmp.lt.s32.totalorder %v885, 0
    %v887 = vsub.s32 0, %v885
    %v888 = vsel %vm886, %v887, %v885
    %v889 = vclz %v888
    %v890 = vsub.s32 %v889, 2
    %vm891 = vcmp.gt.s32.totalorder 0, %v890
    %v892 = vsel %vm891, 0, %v890
    %v893 = vsub.s32 32, %v892
    %v894 = vshll.u32 %v885, %v892
    %v895 = vshrl.u32 %v877, %v893
    %v896 = vor.u32 %v894, %v895
    %v897 = vsub.s32 4294967266, %v892
    %v898 = vadd.s32 %v897, 127
    %v899 = vshll.u32 %v898, 23
    %v900 = vor.u32 4788187, %v899
    %v901 = vand.u32 2147483647, %v900
    %v903 = vcvt.s32.f32 %v896
    %v904 = vmul.f32 %v903, %v901
    %v905 = vxor.u32 %v904, 2147483648
    %v906 = vsel %vm785, %v905, %v904
    %v907 = vsub.s32 4, %v883
    %v908 = vsel %vm785, %v907, %v883
    %v909 = vsel %vm784, %v312, %v906
    %v910 = vsel %vm784, 0, %v908
    %v911 = vmul.f32 %v909, %v909
    %v912 = vmul.f32 %v911, -0.001358992
    %v913 = vadd.f32 %v912, 0.041655596
    %v914 = vmul.f32 %v911, %v913
    %v915 = vadd.f32 %v914, -0.4999988
    %v916 = vmul.f32 %v911, %v915
    %v917 = vadd.f32 1.0, %v916
    %v918 = vmul.f32 %v909, %v909
    %v919 = vmul.f32 %v918, -0.00019511016
    %v920 = vadd.f32 %v919, 0.008332121
    %v921 = vmul.f32 %v918, %v920
    %v922 = vadd.f32 %v921, -0.16666654
    %v923 = vmul.f32 %v918, %v922
    %v924 = vadd.f32 %v923, 1.0
    %v925 = vmul.f32 %v924, %v909
    %vm926 = vweird.f32 %v312
    %v927 = vadd.s32 %v910, 3
    %v928 = vand.u32 %v927, 3
    %vm929 = vcmp.lt.s32.totalorder %v928, 2
    %vm930 = vcmp.eq.s32.totalorder %v928, 0
    %v931 = vxor.u32 %v925, 2147483648
    %v932 = vsel %vm930, %v917, %v931
    %vm933 = vcmp.eq.s32.totalorder %v928, 2
    %v934 = vxor.u32 %v917, 2147483648
    %v935 = vsel %vm933, %v934, %v925
    %v936 = vsel %vm929, %v932, %v935
    %v937 = vsel %vm926, nan, %v936
    %v938 = vand.u32 2147483647, %v471
    %vm939 = vcmp.le.f32.partialorder %v938, 0.7853982
    %vm940 = vcmp.lt.s32.totalorder %v471, 0
    %v941 = vand.u32 %v471, 2139095040
    %v942 = vshrl.u32 %v941, 23
    %v943 = vsub.s32 %v942, 127
    %v944 = vand.u32 2147483647, %v471
    %v945 = vand.u32 %v944, 8388607
    %v946 = vor.u32 %v945, 8388608
    %v947 = vsub.s32 0, %v946
    %v948 = vadd.s32 %v943, 1
    %vm949 = vcmp.gt.s32.totalorder %v948, 0
    %v950 = vsel %vm949, %v948, 0
    %v951 = vshrl.u32 %v950, 5
    %v952 = vand.u32 %v950, 31
    %v953 = vsub.s32 32, %v952
    %v954 = vshrl.u32 683565275, %v953
    %v955 = vshll.u32 683565275, %v952
    %v956 = vshrl.u32 2475754826, %v953
    %v957 = vor.u32 %v955, %v956
    %v958 = vshll.u32 2475754826, %v952
    %v959 = vshrl.u32 2131351028, %v953
    %v960 = vor.u32 %v958, %v959
    %v961 = vshll.u32 2131351028, %v952
    %v962 = vshrl.u32 2102212464, %v953
    %v963 = vor.u32 %v961, %v962
    %v964 = vshll.u32 2102212464, %v952
    %v965 = vshrl.u32 920167782, %v953
    %v966 = vor.u32 %v964, %v965
    %v967 = vshll.u32 920167782, %v952
    %v968 = vshrl.u32 1326507024, %v953
    %v969 = vor.u32 %v967, %v968
    %vm970 = vcmp.lt.s32.totalorder %v951, 1
    %vm971 = vcmp.lt.s32.totalorder %v951, 2
    %vm972 = vcmp.lt.s32.totalorder %v951, 3
    %vm973 = vcmp.lt.s32.totalorder %v951, 4
    %v974 = vsel %vm970, %v954, %v957
    %v975 = vsel %vm973, %v963, 2102212464
    %v976 = vsel %vm972, %v960, %v975
    %v977 = vsel %vm971, %v974, %v976
    %v978 = vsel %vm970, %v957, %v960
    %v979 = vsel %vm973, %v966, 920167782
    %v980 = vsel %vm972, %v963, %v979
    %v981 = vsel %vm971, %v978, %v980
    %v982 = vsel %vm970, %v960, %v963
    %v983 = vsel %vm973, %v969, 1326507024
    %v984 = vsel %vm972, %v966, %v983
    %v985 = vsel %vm971, %v982, %v984
    %v986 = vshll.u32 %v946, 8
    %v987 = vand.u32 %v986, 65535
    %v988 = vshrl.u32 %v986, 16
    %v989 = vand.u32 %v985, 65535
    %v990 = vshrl.u32 %v985, 16
    %v991 = vmul.u32 %v987, %v989
    %v992 = vmul.u32 %v987, %v990
    %v993 = vmul.u32 %v988, %v989
    %v994 = vmul.u32 %v988, %v990
    %v995 = vshll.u32 %v992, 16
    %v996 = vshrl.u32 %v992, 16
    %v997 = vshll.u32 %v993, 16
    %v998 = vshrl.u32 %v993, 16
    %vm999 = vc.u32 %v991, %v995
    %v1000 = vsel %vm999, 1, 0
    %v1001 = vadd.s32 %v991, %v995
    %v1002 = vadd.s32 %v994, %v1000
    %vm1003 = vc.u32 %v1001, %v997
    %v1004 = vsel %vm1003, 1, 0
    %v1005 = vadd.s32 %v1001, %v997
    %v1006 = vadd.s32 %v1002, %v1004
    %v1007 = vadd.s32 %v1006, %v996
    %v1008 = vadd.s32 %v1007, %v998
    %v1009 = vand.u32 %v986, 65535
    %v1010 = vshrl.u32 %v986, 16
    %v1011 = vand.u32 %v981, 65535
    %v1012 = vshrl.u32 %v981, 16
    %v1013 = vmul.u32 %v1009, %v1011
    %v1014 = vmul.u32 %v1009, %v1012
    %v1015 = vmul.u32 %v1010, %v1011
    %v1016 = vmul.u32 %v1010, %v1012
    %v1017 = vshll.u32 %v1014, 16
    %v1018 = vshrl.u32 %v1014, 16
    %v1019 = vshll.u32 %v1015, 16
    %v1020 = vshrl.u32 %v1015, 16
    %vm1021 = vc.u32 %v1013, %v1017
    %v1022 = vsel %vm1021, 1, 0
    %v1023 = vadd.s32 %v1013, %v1017
    %v1024 = vadd.s32 %v1016, %v1022
    %vm1025 = vc.u32 %v1023, %v1019
    %v1026 = vsel %vm1025, 1, 0
    %v1027 = vadd.s32 %v1023, %v1019
    %v1028 = vadd.s32 %v1024, %v1026
    %v1029 = vadd.s32 %v1028, %v1018
    %v1030 = vadd.s32 %v1029, %v1020
    %v1031 = vmul.u32 %v986, %v977
    %v1032 = vadd.s32 %v1008, %v1027
    %vm1033 = vc.u32 %v1008, %v1027
    %v1034 = vadd.s32 %v1030, 1
    %v1035 = vsel %vm1033, %v1034, %v1030
    %v1036 = vadd.s32 %v1031, %v1035
    %v1037 = vadd.s32 %v1036, 536870912
    %v1038 = vshrl.u32 %v1037, 30
    %v1039 = vshll.u32 %v1038, 30
    %v1040 = vsub.s32 %v1036, %v1039
    %vm1041 = vcmp.lt.s32.totalorder %v1040, 0
    %v1042 = vsub.s32 0, %v1040
    %v1043 = vsel %vm1041, %v1042, %v1040
    %v1044 = vclz %v1043
    %v1045 = vsub.s32 %v1044, 2
    %vm1046 = vcmp.gt.s32.totalorder 0, %v1045
    %v1047 = vsel %vm1046, 0, %v1045
    %v1048 = vsub.s32 32, %v1047
    %v1049 = vshll.u32 %v1040, %v1047
    %v1050 = vshrl.u32 %v1032, %v1048
    %v1051 = vor.u32 %v1049, %v1050
    %v1052 = vsub.s32 4294967266, %v1047
    %v1053 = vadd.s32 %v1052, 127
    %v1054 = vshll.u32 %v1053, 23
    %v1055 = vor.u32 4788187, %v1054
    %v1056 = vand.u32 2147483647, %v1055
    %v1058 = vcvt.s32.f32 %v1051
    %v1059 = vmul.f32 %v1058, %v1056
    %v1060 = vxor.u32 %v1059, 2147483648
    %v1061 = vsel %vm940, %v1060, %v1059
    %v1062 = vsub.s32 4, %v1038
    %v1063 = vsel %vm940, %v1062, %v1038
    %v1064 = vsel %vm939, %v471, %v1061
    %v1065 = vsel %vm939, 0, %v1063
    %v1066 = vmul.f32 %v1064, %v1064
    %v1067 = vmul.f32 %v1066, -0.001358992
    %v1068 = vadd.f32 %v1067, 0.041655596
    %v1069 = vmul.f32 %v1066, %v1068
    %v1070 = vadd.f32 %v1069, -0.4999988
    %v1071 = vmul.f32 %v1066, %v1070
    %v1072 = vadd.f32 1.0, %v1071
    %v1073 = vmul.f32 %v1064, %v1064
    %v1074 = vmul.f32 %v1073, -0.00019511016
    %v1075 = vadd.f32 %v1074, 0.008332121
    %v1076 = vmul.f32 %v1073, %v1075
    %v1077 = vadd.f32 %v1076, -0.16666654
    %v1078 = vmul.f32 %v1073, %v1077
    %v1079 = vadd.f32 %v1078, 1.0
    %v1080 = vmul.f32 %v1079, %v1064
    %vm1081 = vweird.f32 %v471
    %v1082 = vadd.s32 %v1065, 3
    %v1083 = vand.u32 %v1082, 3
    %vm1084 = vcmp.lt.s32.totalorder %v1083, 2
    %vm1085 = vcmp.eq.s32.totalorder %v1083, 0
    %v1086 = vxor.u32 %v1080, 2147483648
    %v1087 = vsel %vm1085, %v1072, %v1086
    %vm1088 = vcmp.eq.s32.totalorder %v1083, 2
    %v1089 = vxor.u32 %v1072, 2147483648
    %v1090 = vsel %vm1088, %v1089, %v1080
    %v1091 = vsel %vm1084, %v1087, %v1090
    %v1092 = vsel %vm1081, nan, %v1091
    %v1093 = vpack.c.bf16 %v937, %v937
    %v1094 = vpack.c.bf16 %v1092, %v1092
    %v1095 = vld [vmem:[#allocation7] sm:$0xff]
    %v1096 = vld [vmem:[#allocation7 + $0x8] sm:$0xff]
    %v1097 = vld [vmem:[#allocation7 + $0x10] sm:$0xff]
    %v1098 = vld [vmem:[#allocation7 + $0x18] sm:$0xff]
    %v1099 = vld [vmem:[#allocation7 + $0x20] sm:$0xff]
    %v1100 = vld [vmem:[#allocation7 + $0x28] sm:$0xff]
    %v1101 = vld [vmem:[#allocation7 + $0x30] sm:$0xff]
    %v1102 = vld [vmem:[#allocation7 + $0x38] sm:$0xff]
    %v1103 = vld [vmem:[#allocation7 + $0x40] sm:$0xff]
    %v1104 = vld [vmem:[#allocation7 + $0x48] sm:$0xff]
    %v1105 = vld [vmem:[#allocation7 + $0x50] sm:$0xff]
    %v1106 = vld [vmem:[#allocation7 + $0x58] sm:$0xff]
    %v1107 = vld [vmem:[#allocation7 + $0x60] sm:$0xff]
    %v1108 = vld [vmem:[#allocation7 + $0x68] sm:$0xff]
    %v1109 = vld [vmem:[#allocation7 + $0x70] sm:$0xff]
    %v1110 = vld [vmem:[#allocation7 + $0x78] sm:$0xff]
    %v1111 = vld [vmem:[#allocation7 + $0x80] sm:$0xff]
    %v1112 = vld [vmem:[#allocation7 + $0x88] sm:$0xff]
    %v1113 = vld [vmem:[#allocation7 + $0x90] sm:$0xff]
    %v1114 = vld [vmem:[#allocation7 + $0x98] sm:$0xff]
    %v1115 = vld [vmem:[#allocation7 + $0xa0] sm:$0xff]
    %v1116 = vld [vmem:[#allocation7 + $0xa8] sm:$0xff]
    %v1117 = vld [vmem:[#allocation7 + $0xb0] sm:$0xff]
    %v1118 = vld [vmem:[#allocation7 + $0xb8] sm:$0xff]
    %v1119 = vld [vmem:[#allocation7 + $0xc0] sm:$0xff]
    %v1120 = vld [vmem:[#allocation7 + $0xc8] sm:$0xff]
    %v1121 = vld [vmem:[#allocation7 + $0xd0] sm:$0xff]
    %v1122 = vld [vmem:[#allocation7 + $0xd8] sm:$0xff]
    %v1123 = vld [vmem:[#allocation7 + $0xe0] sm:$0xff]
    %v1124 = vld [vmem:[#allocation7 + $0xe8] sm:$0xff]
    %v1125 = vld [vmem:[#allocation7 + $0xf0] sm:$0xff]
    %v1126 = vld [vmem:[#allocation7 + $0xf8] sm:$0xff]
    %v1127 = vld [vmem:[#allocation7 + $0x100] sm:$0xff]
    %v1128 = vld [vmem:[#allocation7 + $0x108] sm:$0xff]
    %v1129 = vld [vmem:[#allocation7 + $0x110] sm:$0xff]
    %v1130 = vld [vmem:[#allocation7 + $0x118] sm:$0xff]
    %v1131 = vld [vmem:[#allocation7 + $0x120] sm:$0xff]
    %v1132 = vld [vmem:[#allocation7 + $0x128] sm:$0xff]
    %v1133 = vld [vmem:[#allocation7 + $0x130] sm:$0xff]
    %v1134 = vld [vmem:[#allocation7 + $0x138] sm:$0xff]
    %v1135 = vld [vmem:[#allocation8] sm:$0xff]
    %v1136 = vld [vmem:[#allocation8 + $0x8] sm:$0xff]
    %v1137 = vld [vmem:[#allocation8 + $0x10] sm:$0xff]
    %v1138 = vld [vmem:[#allocation8 + $0x18] sm:$0xff]
    %v1139 = vld [vmem:[#allocation8 + $0x20] sm:$0xff]
    %v1140 = vld [vmem:[#allocation8 + $0x28] sm:$0xff]
    %v1141 = vld [vmem:[#allocation8 + $0x30] sm:$0xff]
    %v1142 = vld [vmem:[#allocation8 + $0x38] sm:$0xff]
    %v1143 = vld [vmem:[#allocation8 + $0x40] sm:$0xff]
    %v1144 = vld [vmem:[#allocation8 + $0x48] sm:$0xff]
    %v1145 = vld [vmem:[#allocation8 + $0x50] sm:$0xff]
    %v1146 = vld [vmem:[#allocation8 + $0x58] sm:$0xff]
    %v1147 = vld [vmem:[#allocation8 + $0x60] sm:$0xff]
    %v1148 = vld [vmem:[#allocation8 + $0x68] sm:$0xff]
    %v1149 = vld [vmem:[#allocation8 + $0x70] sm:$0xff]
    %v1150 = vld [vmem:[#allocation8 + $0x78] sm:$0xff]
    %v1151 = vld [vmem:[#allocation8 + $0x80] sm:$0xff]
    %v1152 = vld [vmem:[#allocation8 + $0x88] sm:$0xff]
    %v1153 = vld [vmem:[#allocation8 + $0x90] sm:$0xff]
    %v1154 = vld [vmem:[#allocation8 + $0x98] sm:$0xff]
    %v1155 = vld [vmem:[#allocation8 + $0xa0] sm:$0xff]
    %v1156 = vld [vmem:[#allocation8 + $0xa8] sm:$0xff]
    %v1157 = vld [vmem:[#allocation8 + $0xb0] sm:$0xff]
    %v1158 = vld [vmem:[#allocation8 + $0xb8] sm:$0xff]
    %v1159 = vld [vmem:[#allocation8 + $0xc0] sm:$0xff]
    %v1160 = vld [vmem:[#allocation8 + $0xc8] sm:$0xff]
    %v1161 = vld [vmem:[#allocation8 + $0xd0] sm:$0xff]
    %v1162 = vld [vmem:[#allocation8 + $0xd8] sm:$0xff]
    %v1163 = vld [vmem:[#allocation8 + $0xe0] sm:$0xff]
    %v1164 = vld [vmem:[#allocation8 + $0xe8] sm:$0xff]
    %v1165 = vld [vmem:[#allocation8 + $0xf0] sm:$0xff]
    %v1166 = vld [vmem:[#allocation8 + $0xf8] sm:$0xff]
    %v1167 = vld [vmem:[#allocation8 + $0x100] sm:$0xff]
    %v1168 = vld [vmem:[#allocation8 + $0x108] sm:$0xff]
    %v1169 = vld [vmem:[#allocation8 + $0x110] sm:$0xff]
    %v1170 = vld [vmem:[#allocation8 + $0x118] sm:$0xff]
    %v1171 = vld [vmem:[#allocation8 + $0x120] sm:$0xff]
    %v1172 = vld [vmem:[#allocation8 + $0x128] sm:$0xff]
    %v1173 = vld [vmem:[#allocation8 + $0x130] sm:$0xff]
    %v1174 = vld [vmem:[#allocation8 + $0x138] sm:$0xff]
    %v1215 = vunpack.c.l.b16 %v1135
    %v1216 = vunpack.c.h.b16 %v1135
    %v1217 = vunpack.c.l.b16 %v1136
    %v1218 = vunpack.c.h.b16 %v1136
    %v1219 = vunpack.c.l.b16 %v1137
    %v1220 = vunpack.c.h.b16 %v1137
    %v1221 = vunpack.c.l.b16 %v1138
    %v1222 = vunpack.c.h.b16 %v1138
    %v1223 = vunpack.c.l.b16 %v1139
    %v1224 = vunpack.c.h.b16 %v1139
    %v1225 = vunpack.c.l.b16 %v1140
    %v1226 = vunpack.c.h.b16 %v1140
    %v1227 = vunpack.c.l.b16 %v1141
    %v1228 = vunpack.c.h.b16 %v1141
    %v1229 = vunpack.c.l.b16 %v1142
    %v1230 = vunpack.c.h.b16 %v1142
    %v1231 = vunpack.c.l.b16 %v1143
    %v1232 = vunpack.c.h.b16 %v1143
    %v1233 = vunpack.c.l.b16 %v1144
    %v1234 = vunpack.c.h.b16 %v1144
    %v1235 = vunpack.c.l.b16 %v1145
    %v1236 = vunpack.c.h.b16 %v1145
    %v1237 = vunpack.c.l.b16 %v1146
    %v1238 = vunpack.c.h.b16 %v1146
    %v1239 = vunpack.c.l.b16 %v1147
    %v1240 = vunpack.c.h.b16 %v1147
    %v1241 = vunpack.c.l.b16 %v1148
    %v1242 = vunpack.c.h.b16 %v1148
    %v1243 = vunpack.c.l.b16 %v1149
    %v1244 = vunpack.c.h.b16 %v1149
    %v1245 = vunpack.c.l.b16 %v1150
    %v1246 = vunpack.c.h.b16 %v1150
    %v1247 = vunpack.c.l.b16 %v1151
    %v1248 = vunpack.c.h.b16 %v1151
    %v1249 = vunpack.c.l.b16 %v1152
    %v1250 = vunpack.c.h.b16 %v1152
    %v1251 = vunpack.c.l.b16 %v1153
    %v1252 = vunpack.c.h.b16 %v1153
    %v1253 = vunpack.c.l.b16 %v1154
    %v1254 = vunpack.c.h.b16 %v1154
    %v1255 = vunpack.c.l.b16 %v1155
    %v1256 = vunpack.c.h.b16 %v1155
    %v1257 = vunpack.c.l.b16 %v1156
    %v1258 = vunpack.c.h.b16 %v1156
    %v1259 = vunpack.c.l.b16 %v1157
    %v1260 = vunpack.c.h.b16 %v1157
    %v1261 = vunpack.c.l.b16 %v1158
    %v1262 = vunpack.c.h.b16 %v1158
    %v1263 = vunpack.c.l.b16 %v1159
    %v1264 = vunpack.c.h.b16 %v1159
    %v1265 = vunpack.c.l.b16 %v1160
    %v1266 = vunpack.c.h.b16 %v1160
    %v1267 = vunpack.c.l.b16 %v1161
    %v1268 = vunpack.c.h.b16 %v1161
    %v1269 = vunpack.c.l.b16 %v1162
    %v1270 = vunpack.c.h.b16 %v1162
    %v1271 = vunpack.c.l.b16 %v1163
    %v1272 = vunpack.c.h.b16 %v1163
    %v1273 = vunpack.c.l.b16 %v1164
    %v1274 = vunpack.c.h.b16 %v1164
    %v1275 = vunpack.c.l.b16 %v1165
    %v1276 = vunpack.c.h.b16 %v1165
    %v1277 = vunpack.c.l.b16 %v1166
    %v1278 = vunpack.c.h.b16 %v1166
    %v1279 = vunpack.c.l.b16 %v1167
    %v1280 = vunpack.c.h.b16 %v1167
    %v1281 = vunpack.c.l.b16 %v1168
    %v1282 = vunpack.c.h.b16 %v1168
    %v1283 = vunpack.c.l.b16 %v1169
    %v1284 = vunpack.c.h.b16 %v1169
    %v1285 = vunpack.c.l.b16 %v1170
    %v1286 = vunpack.c.h.b16 %v1170
    %v1287 = vunpack.c.l.b16 %v1171
    %v1288 = vunpack.c.h.b16 %v1171
    %v1289 = vunpack.c.l.b16 %v1172
    %v1290 = vunpack.c.h.b16 %v1172
    %v1291 = vunpack.c.l.b16 %v1173
    %v1292 = vunpack.c.h.b16 %v1173
    %v1293 = vunpack.c.l.b16 %v1174
    %v1294 = vunpack.c.h.b16 %v1174
    %v1295 = vpack.c.b16 %v1219, %v1215
    %v1296 = vpack.c.b16 %v1220, %v1216
    %v1297 = vpack.c.b16 %v1221, %v1217
    %v1298 = vpack.c.b16 %v1222, %v1218
    %v1299 = vpack.c.b16 %v1227, %v1223
    %v1300 = vpack.c.b16 %v1228, %v1224
    %v1301 = vpack.c.b16 %v1229, %v1225
    %v1302 = vpack.c.b16 %v1230, %v1226
    %v1303 = vpack.c.b16 %v1235, %v1231
    %v1304 = vpack.c.b16 %v1236, %v1232
    %v1305 = vpack.c.b16 %v1237, %v1233
    %v1306 = vpack.c.b16 %v1238, %v1234
    %v1307 = vpack.c.b16 %v1243, %v1239
    %v1308 = vpack.c.b16 %v1244, %v1240
    %v1309 = vpack.c.b16 %v1245, %v1241
    %v1310 = vpack.c.b16 %v1246, %v1242
    %v1311 = vpack.c.b16 %v1251, %v1247
    %v1312 = vpack.c.b16 %v1252, %v1248
    %v1313 = vpack.c.b16 %v1253, %v1249
    %v1314 = vpack.c.b16 %v1254, %v1250
    %v1315 = vpack.c.b16 %v1259, %v1255
    %v1316 = vpack.c.b16 %v1260, %v1256
    %v1317 = vpack.c.b16 %v1261, %v1257
    %v1318 = vpack.c.b16 %v1262, %v1258
    %v1319 = vpack.c.b16 %v1267, %v1263
    %v1320 = vpack.c.b16 %v1268, %v1264
    %v1321 = vpack.c.b16 %v1269, %v1265
    %v1322 = vpack.c.b16 %v1270, %v1266
    %v1323 = vpack.c.b16 %v1275, %v1271
    %v1324 = vpack.c.b16 %v1276, %v1272
    %v1325 = vpack.c.b16 %v1277, %v1273
    %v1326 = vpack.c.b16 %v1278, %v1274
    %v1327 = vpack.c.b16 %v1283, %v1279
    %v1328 = vpack.c.b16 %v1284, %v1280
    %v1329 = vpack.c.b16 %v1285, %v1281
    %v1330 = vpack.c.b16 %v1286, %v1282
    %v1331 = vpack.c.b16 %v1291, %v1287
    %v1332 = vpack.c.b16 %v1292, %v1288
    %v1333 = vpack.c.b16 %v1293, %v1289
    %v1334 = vpack.c.b16 %v1294, %v1290
    %vm1375 = vcmask 261120
    %v1377 = vsel %vm1375, %v1094, 0
    %1379 = vmatpush.bf16.msra.mxu0 %v1323
    %1380 = vmatpush.bf16.msra.mxu0 %v1319
    %1381 = vmatpush.bf16.msra.mxu0 %v1315
    %1382 = vmatpush.bf16.msra.mxu0 %v1311
    %1383 = vmatpush.bf16.msra.mxu0 %v1307
    %1384 = vmatpush.bf16.msra.mxu0 %v1303
    %1385 = vmatpush.bf16.msra.mxu0 %v1299
    %1386 = vmatpush.bf16.msra.mxu0 %v1295
    %1387 = vmatmul.bf16.gmra.mxu0 %v1093
    %v1388 = vpop.f32.mrf.mxu0
    %v1389 = vadd.f32 0.0, %v1388
    %v1390 = vpop.f32.mrf.mxu0
    %1391 = vdwg.mxu0
    %1392 = vmatpush.bf16.msra.mxu0 0
    %1393 = vmatpush.bf16.msra.mxu0 0
    %1394 = vmatpush.bf16.msra.mxu0 0
    %1395 = vmatpush.bf16.msra.mxu0 0
    %1396 = vmatpush.bf16.msra.mxu0 0
    %1397 = vmatpush.bf16.msra.mxu0 0
    %1398 = vmatpush.bf16.msra.mxu0 %v1331
    %1399 = vmatpush.bf16.msra.mxu0 %v1327
    %1400 = vmatmul.bf16.gmra.mxu0 %v1377
    %v1401 = vpop.f32.mrf.mxu0
    %v1402 = vadd.f32 %v1389, %v1401
    %v1403 = vpop.f32.mrf.mxu0
    %1404 = vdwg.mxu0
    %1405 = vmatpush.bf16.msra.mxu0 %v1324
    %1406 = vmatpush.bf16.msra.mxu0 %v1320
    %1407 = vmatpush.bf16.msra.mxu0 %v1316
    %1408 = vmatpush.bf16.msra.mxu0 %v1312
    %1409 = vmatpush.bf16.msra.mxu0 %v1308
    %1410 = vmatpush.bf16.msra.mxu0 %v1304
    %1411 = vmatpush.bf16.msra.mxu0 %v1300
    %1412 = vmatpush.bf16.msra.mxu0 %v1296
    %1413 = vmatmul.bf16.gmra.mxu0 %v1093
    %v1414 = vpop.f32.mrf.mxu0
    %v1415 = vadd.f32 0.0, %v1414
    %v1416 = vpop.f32.mrf.mxu0
    %1417 = vdwg.mxu0
    %1418 = vmatpush.bf16.msra.mxu0 0
    %1419 = vmatpush.bf16.msra.mxu0 0
    %1420 = vmatpush.bf16.msra.mxu0 0
    %1421 = vmatpush.bf16.msra.mxu0 0
    %1422 = vmatpush.bf16.msra.mxu0 0
    %1423 = vmatpush.bf16.msra.mxu0 0
    %1424 = vmatpush.bf16.msra.mxu0 %v1332
    %1425 = vmatpush.bf16.msra.mxu0 %v1328
    %1426 = vmatmul.bf16.gmra.mxu0 %v1377
    %v1427 = vpop.f32.mrf.mxu0
    %v1428 = vadd.f32 %v1415, %v1427
    %v1429 = vpop.f32.mrf.mxu0
    %1430 = vdwg.mxu0
    %1431 = vmatpush.bf16.msra.mxu0 %v1325
    %1432 = vmatpush.bf16.msra.mxu0 %v1321
    %1433 = vmatpush.bf16.msra.mxu0 %v1317
    %1434 = vmatpush.bf16.msra.mxu0 %v1313
    %1435 = vmatpush.bf16.msra.mxu0 %v1309
    %1436 = vmatpush.bf16.msra.mxu0 %v1305
    %1437 = vmatpush.bf16.msra.mxu0 %v1301
    %1438 = vmatpush.bf16.msra.mxu0 %v1297
    %1439 = vmatmul.bf16.gmra.mxu0 %v1093
    %v1440 = vpop.f32.mrf.mxu0
    %v1441 = vadd.f32 0.0, %v1440
    %v1442 = vpop.f32.mrf.mxu0
    %1443 = vdwg.mxu0
    %1444 = vmatpush.bf16.msra.mxu0 0
    %1445 = vmatpush.bf16.msra.mxu0 0
    %1446 = vmatpush.bf16.msra.mxu0 0
    %1447 = vmatpush.bf16.msra.mxu0 0
    %1448 = vmatpush.bf16.msra.mxu0 0
    %1449 = vmatpush.bf16.msra.mxu0 0
    %1450 = vmatpush.bf16.msra.mxu0 %v1333
    %1451 = vmatpush.bf16.msra.mxu0 %v1329
    %1452 = vmatmul.bf16.gmra.mxu0 %v1377
    %v1453 = vpop.f32.mrf.mxu0
    %v1454 = vadd.f32 %v1441, %v1453
    %v1455 = vpop.f32.mrf.mxu0
    %1456 = vdwg.mxu0
    %1457 = vmatpush.bf16.msra.mxu0 %v1326
    %1458 = vmatpush.bf16.msra.mxu0 %v1322
    %1459 = vmatpush.bf16.msra.mxu0 %v1318
    %1460 = vmatpush.bf16.msra.mxu0 %v1314
    %1461 = vmatpush.bf16.msra.mxu0 %v1310
    %1462 = vmatpush.bf16.msra.mxu0 %v1306
    %1463 = vmatpush.bf16.msra.mxu0 %v1302
    %1464 = vmatpush.bf16.msra.mxu0 %v1298
    %1465 = vmatmul.bf16.gmra.mxu0 %v1093
    %v1466 = vpop.f32.mrf.mxu0
    %v1467 = vadd.f32 0.0, %v1466
    %v1468 = vpop.f32.mrf.mxu0
    %1469 = vdwg.mxu0
    %1470 = vmatpush.bf16.msra.mxu0 0
    %1471 = vmatpush.bf16.msra.mxu0 0
    %1472 = vmatpush.bf16.msra.mxu0 0
    %1473 = vmatpush.bf16.msra.mxu0 0
    %1474 = vmatpush.bf16.msra.mxu0 0
    %1475 = vmatpush.bf16.msra.mxu0 0
    %1476 = vmatpush.bf16.msra.mxu0 %v1334
    %1477 = vmatpush.bf16.msra.mxu0 %v1330
    %1478 = vmatmul.bf16.gmra.mxu0 %v1377
    %v1479 = vpop.f32.mrf.mxu0
    %v1480 = vadd.f32 %v1467, %v1479
    %v1481 = vpop.f32.mrf.mxu0
    %1482 = vdwg.mxu0
    %v1523 = vunpack.c.l.b16 %v1095
    %v1524 = vunpack.c.h.b16 %v1095
    %v1525 = vunpack.c.l.b16 %v1096
    %v1526 = vunpack.c.h.b16 %v1096
    %v1527 = vunpack.c.l.b16 %v1097
    %v1528 = vunpack.c.h.b16 %v1097
    %v1529 = vunpack.c.l.b16 %v1098
    %v1530 = vunpack.c.h.b16 %v1098
    %v1531 = vunpack.c.l.b16 %v1099
    %v1532 = vunpack.c.h.b16 %v1099
    %v1533 = vunpack.c.l.b16 %v1100
    %v1534 = vunpack.c.h.b16 %v1100
    %v1535 = vunpack.c.l.b16 %v1101
    %v1536 = vunpack.c.h.b16 %v1101
    %v1537 = vunpack.c.l.b16 %v1102
    %v1538 = vunpack.c.h.b16 %v1102
    %v1539 = vunpack.c.l.b16 %v1103
    %v1540 = vunpack.c.h.b16 %v1103
    %v1541 = vunpack.c.l.b16 %v1104
    %v1542 = vunpack.c.h.b16 %v1104
    %v1543 = vunpack.c.l.b16 %v1105
    %v1544 = vunpack.c.h.b16 %v1105
    %v1545 = vunpack.c.l.b16 %v1106
    %v1546 = vunpack.c.h.b16 %v1106
    %v1547 = vunpack.c.l.b16 %v1107
    %v1548 = vunpack.c.h.b16 %v1107
    %v1549 = vunpack.c.l.b16 %v1108
    %v1550 = vunpack.c.h.b16 %v1108
    %v1551 = vunpack.c.l.b16 %v1109
    %v1552 = vunpack.c.h.b16 %v1109
    %v1553 = vunpack.c.l.b16 %v1110
    %v1554 = vunpack.c.h.b16 %v1110
    %v1555 = vunpack.c.l.b16 %v1111
    %v1556 = vunpack.c.h.b16 %v1111
    %v1557 = vunpack.c.l.b16 %v1112
    %v1558 = vunpack.c.h.b16 %v1112
    %v1559 = vunpack.c.l.b16 %v1113
    %v1560 = vunpack.c.h.b16 %v1113
    %v1561 = vunpack.c.l.b16 %v1114
    %v1562 = vunpack.c.h.b16 %v1114
    %v1563 = vunpack.c.l.b16 %v1115
    %v1564 = vunpack.c.h.b16 %v1115
    %v1565 = vunpack.c.l.b16 %v1116
    %v1566 = vunpack.c.h.b16 %v1116
    %v1567 = vunpack.c.l.b16 %v1117
    %v1568 = vunpack.c.h.b16 %v1117
    %v1569 = vunpack.c.l.b16 %v1118
    %v1570 = vunpack.c.h.b16 %v1118
    %v1571 = vunpack.c.l.b16 %v1119
    %v1572 = vunpack.c.h.b16 %v1119
    %v1573 = vunpack.c.l.b16 %v1120
    %v1574 = vunpack.c.h.b16 %v1120
    %v1575 = vunpack.c.l.b16 %v1121
    %v1576 = vunpack.c.h.b16 %v1121
    %v1577 = vunpack.c.l.b16 %v1122
    %v1578 = vunpack.c.h.b16 %v1122
    %v1579 = vunpack.c.l.b16 %v1123
    %v1580 = vunpack.c.h.b16 %v1123
    %v1581 = vunpack.c.l.b16 %v1124
    %v1582 = vunpack.c.h.b16 %v1124
    %v1583 = vunpack.c.l.b16 %v1125
    %v1584 = vunpack.c.h.b16 %v1125
    %v1585 = vunpack.c.l.b16 %v1126
    %v1586 = vunpack.c.h.b16 %v1126
    %v1587 = vunpack.c.l.b16 %v1127
    %v1588 = vunpack.c.h.b16 %v1127
    %v1589 = vunpack.c.l.b16 %v1128
    %v1590 = vunpack.c.h.b16 %v1128
    %v1591 = vunpack.c.l.b16 %v1129
    %v1592 = vunpack.c.h.b16 %v1129
    %v1593 = vunpack.c.l.b16 %v1130
    %v1594 = vunpack.c.h.b16 %v1130
    %v1595 = vunpack.c.l.b16 %v1131
    %v1596 = vunpack.c.h.b16 %v1131
    %v1597 = vunpack.c.l.b16 %v1132
    %v1598 = vunpack.c.h.b16 %v1132
    %v1599 = vunpack.c.l.b16 %v1133
    %v1600 = vunpack.c.h.b16 %v1133
    %v1601 = vunpack.c.l.b16 %v1134
    %v1602 = vunpack.c.h.b16 %v1134
    %v1603 = vpack.c.b16 %v1527, %v1523
    %v1604 = vpack.c.b16 %v1528, %v1524
    %v1605 = vpack.c.b16 %v1529, %v1525
    %v1606 = vpack.c.b16 %v1530, %v1526
    %v1607 = vpack.c.b16 %v1535, %v1531
    %v1608 = vpack.c.b16 %v1536, %v1532
    %v1609 = vpack.c.b16 %v1537, %v1533
    %v1610 = vpack.c.b16 %v1538, %v1534
    %v1611 = vpack.c.b16 %v1543, %v1539
    %v1612 = vpack.c.b16 %v1544, %v1540
    %v1613 = vpack.c.b16 %v1545, %v1541
    %v1614 = vpack.c.b16 %v1546, %v1542
    %v1615 = vpack.c.b16 %v1551, %v1547
    %v1616 = vpack.c.b16 %v1552, %v1548
    %v1617 = vpack.c.b16 %v1553, %v1549
    %v1618 = vpack.c.b16 %v1554, %v1550
    %v1619 = vpack.c.b16 %v1559, %v1555
    %v1620 = vpack.c.b16 %v1560, %v1556
    %v1621 = vpack.c.b16 %v1561, %v1557
    %v1622 = vpack.c.b16 %v1562, %v1558
    %v1623 = vpack.c.b16 %v1567, %v1563
    %v1624 = vpack.c.b16 %v1568, %v1564
    %v1625 = vpack.c.b16 %v1569, %v1565
    %v1626 = vpack.c.b16 %v1570, %v1566
    %v1627 = vpack.c.b16 %v1575, %v1571
    %v1628 = vpack.c.b16 %v1576, %v1572
    %v1629 = vpack.c.b16 %v1577, %v1573
    %v1630 = vpack.c.b16 %v1578, %v1574
    %v1631 = vpack.c.b16 %v1583, %v1579
    %v1632 = vpack.c.b16 %v1584, %v1580
    %v1633 = vpack.c.b16 %v1585, %v1581
    %v1634 = vpack.c.b16 %v1586, %v1582
    %v1635 = vpack.c.b16 %v1591, %v1587
    %v1636 = vpack.c.b16 %v1592, %v1588
    %v1637 = vpack.c.b16 %v1593, %v1589
    %v1638 = vpack.c.b16 %v1594, %v1590
    %v1639 = vpack.c.b16 %v1599, %v1595
    %v1640 = vpack.c.b16 %v1600, %v1596
    %v1641 = vpack.c.b16 %v1601, %v1597
    %v1642 = vpack.c.b16 %v1602, %v1598
    %v1684 = vsel %vm1375, %v782, 0
    %1686 = vmatpush.bf16.msra.mxu0 %v1631
    %1687 = vmatpush.bf16.msra.mxu0 %v1627
    %1688 = vmatpush.bf16.msra.mxu0 %v1623
    %1689 = vmatpush.bf16.msra.mxu0 %v1619
    %1690 = vmatpush.bf16.msra.mxu0 %v1615
    %1691 = vmatpush.bf16.msra.mxu0 %v1611
    %1692 = vmatpush.bf16.msra.mxu0 %v1607
    %1693 = vmatpush.bf16.msra.mxu0 %v1603
    %1694 = vmatmul.bf16.gmra.mxu0 %v781
    %v1695 = vpop.f32.mrf.mxu0
    %v1696 = vadd.f32 %v1402, %v1695
    %v1697 = vpop.f32.mrf.mxu0
    %1698 = vdwg.mxu0
    %1699 = vmatpush.bf16.msra.mxu0 0
    %1700 = vmatpush.bf16.msra.mxu0 0
    %1701 = vmatpush.bf16.msra.mxu0 0
    %1702 = vmatpush.bf16.msra.mxu0 0
    %1703 = vmatpush.bf16.msra.mxu0 0
    %1704 = vmatpush.bf16.msra.mxu0 0
    %1705 = vmatpush.bf16.msra.mxu0 %v1639
    %1706 = vmatpush.bf16.msra.mxu0 %v1635
    %1707 = vmatmul.bf16.gmra.mxu0 %v1684
    %v1708 = vpop.f32.mrf.mxu0
    %v1709 = vadd.f32 %v1696, %v1708
    %v1710 = vpop.f32.mrf.mxu0
    %1711 = vdwg.mxu0
    %1712 = vmatpush.bf16.msra.mxu0 %v1632
    %1713 = vmatpush.bf16.msra.mxu0 %v1628
    %1714 = vmatpush.bf16.msra.mxu0 %v1624
    %1715 = vmatpush.bf16.msra.mxu0 %v1620
    %1716 = vmatpush.bf16.msra.mxu0 %v1616
    %1717 = vmatpush.bf16.msra.mxu0 %v1612
    %1718 = vmatpush.bf16.msra.mxu0 %v1608
    %1719 = vmatpush.bf16.msra.mxu0 %v1604
    %1720 = vmatmul.bf16.gmra.mxu0 %v781
    %v1721 = vpop.f32.mrf.mxu0
    %v1722 = vadd.f32 %v1428, %v1721
    %v1723 = vpop.f32.mrf.mxu0
    %1724 = vdwg.mxu0
    %1725 = vmatpush.bf16.msra.mxu0 0
    %1726 = vmatpush.bf16.msra.mxu0 0
    %1727 = vmatpush.bf16.msra.mxu0 0
    %1728 = vmatpush.bf16.msra.mxu0 0
    %1729 = vmatpush.bf16.msra.mxu0 0
    %1730 = vmatpush.bf16.msra.mxu0 0
    %1731 = vmatpush.bf16.msra.mxu0 %v1640
    %1732 = vmatpush.bf16.msra.mxu0 %v1636
    %1733 = vmatmul.bf16.gmra.mxu0 %v1684
    %v1734 = vpop.f32.mrf.mxu0
    %v1735 = vadd.f32 %v1722, %v1734
    %v1736 = vpop.f32.mrf.mxu0
    %1737 = vdwg.mxu0
    %1738 = vmatpush.bf16.msra.mxu0 %v1633
    %1739 = vmatpush.bf16.msra.mxu0 %v1629
    %1740 = vmatpush.bf16.msra.mxu0 %v1625
    %1741 = vmatpush.bf16.msra.mxu0 %v1621
    %1742 = vmatpush.bf16.msra.mxu0 %v1617
    %1743 = vmatpush.bf16.msra.mxu0 %v1613
    %1744 = vmatpush.bf16.msra.mxu0 %v1609
    %1745 = vmatpush.bf16.msra.mxu0 %v1605
    %1746 = vmatmul.bf16.gmra.mxu0 %v781
    %v1747 = vpop.f32.mrf.mxu0
    %v1748 = vadd.f32 %v1454, %v1747
    %v1749 = vpop.f32.mrf.mxu0
    %1750 = vdwg.mxu0
    %1751 = vmatpush.bf16.msra.mxu0 0
    %1752 = vmatpush.bf16.msra.mxu0 0
    %1753 = vmatpush.bf16.msra.mxu0 0
    %1754 = vmatpush.bf16.msra.mxu0 0
    %1755 = vmatpush.bf16.msra.mxu0 0
    %1756 = vmatpush.bf16.msra.mxu0 0
    %1757 = vmatpush.bf16.msra.mxu0 %v1641
    %1758 = vmatpush.bf16.msra.mxu0 %v1637
    %1759 = vmatmul.bf16.gmra.mxu0 %v1684
    %v1760 = vpop.f32.mrf.mxu0
    %v1761 = vadd.f32 %v1748, %v1760
    %v1762 = vpop.f32.mrf.mxu0
    %1763 = vdwg.mxu0
    %1764 = vmatpush.bf16.msra.mxu0 %v1634
    %1765 = vmatpush.bf16.msra.mxu0 %v1630
    %1766 = vmatpush.bf16.msra.mxu0 %v1626
    %1767 = vmatpush.bf16.msra.mxu0 %v1622
    %1768 = vmatpush.bf16.msra.mxu0 %v1618
    %1769 = vmatpush.bf16.msra.mxu0 %v1614
    %1770 = vmatpush.bf16.msra.mxu0 %v1610
    %1771 = vmatpush.bf16.msra.mxu0 %v1606
    %1772 = vmatmul.bf16.gmra.mxu0 %v781
    %v1773 = vpop.f32.mrf.mxu0
    %v1774 = vadd.f32 %v1480, %v1773
    %v1775 = vpop.f32.mrf.mxu0
    %1776 = vdwg.mxu0
    %1777 = vmatpush.bf16.msra.mxu0 0
    %1778 = vmatpush.bf16.msra.mxu0 0
    %1779 = vmatpush.bf16.msra.mxu0 0
    %1780 = vmatpush.bf16.msra.mxu0 0
    %1781 = vmatpush.bf16.msra.mxu0 0
    %1782 = vmatpush.bf16.msra.mxu0 0
    %1783 = vmatpush.bf16.msra.mxu0 %v1642
    %1784 = vmatpush.bf16.msra.mxu0 %v1638
    %1785 = vmatmul.bf16.gmra.mxu0 %v1684
    %v1786 = vpop.f32.mrf.mxu0
    %v1787 = vadd.f32 %v1774, %v1786
    %v1788 = vpop.f32.mrf.mxu0
    %1789 = vdwg.mxu0
    %v1790 = vld [vmem:[#allocation10] sm:$0xf]
    %v1792 = vperm.slane %v1790, 0
    %v1793 = vperm.slane %v1790, 1
    %v1794 = vperm.slane %v1790, 2
    %v1795 = vperm.slane %v1790, 3
    %v1800 = vadd.f32 %v1709, %v1792
    %v1801 = vadd.f32 %v1735, %v1793
    %v1802 = vadd.f32 %v1761, %v1794
    %v1803 = vadd.f32 %v1787, %v1795
    %v1804 = vtanh.pop %v1800
    %v1805 = vtanh.pop %v1801
    %v1806 = vtanh.pop %v1802
    %v1807 = vtanh.pop %v1803
    %v1808 = vpack.c.bf16 %v1804, %v1804
    %v1809 = vpack.c.bf16 %v1805, %v1805
    %v1810 = vpack.c.bf16 %v1806, %v1806
    %v1811 = vpack.c.bf16 %v1807, %v1807
    %v1812 = vld [vmem:[#allocation11] sm:$0xf]
    %v1813 = vld [vmem:[#allocation11 + $0x4] sm:$0xf]
    %v1814 = vld [vmem:[#allocation11 + $0x8] sm:$0xf]
    %v1815 = vld [vmem:[#allocation11 + $0xc] sm:$0xf]
    %v1816 = vld [vmem:[#allocation11 + $0x10] sm:$0xf]
    %v1817 = vld [vmem:[#allocation11 + $0x14] sm:$0xf]
    %v1818 = vld [vmem:[#allocation11 + $0x18] sm:$0xf]
    %v1819 = vld [vmem:[#allocation11 + $0x1c] sm:$0xf]
    %v1820 = vld [vmem:[#allocation11 + $0x20] sm:$0xf]
    %v1821 = vld [vmem:[#allocation11 + $0x24] sm:$0xf]
    %v1822 = vld [vmem:[#allocation11 + $0x28] sm:$0xf]
    %v1823 = vld [vmem:[#allocation11 + $0x2c] sm:$0xf]
    %v1824 = vld [vmem:[#allocation11 + $0x30] sm:$0xf]
    %v1825 = vld [vmem:[#allocation11 + $0x34] sm:$0xf]
    %v1826 = vld [vmem:[#allocation11 + $0x38] sm:$0xf]
    %v1827 = vld [vmem:[#allocation11 + $0x3c] sm:$0xf]
    %v1828 = vld [vmem:[#allocation11 + $0x40] sm:$0xf]
    %v1829 = vld [vmem:[#allocation11 + $0x44] sm:$0xf]
    %v1830 = vld [vmem:[#allocation11 + $0x48] sm:$0xf]
    %v1831 = vld [vmem:[#allocation11 + $0x4c] sm:$0xf]
    %v1832 = vld [vmem:[#allocation11 + $0x50] sm:$0xf]
    %v1833 = vld [vmem:[#allocation11 + $0x54] sm:$0xf]
    %v1834 = vld [vmem:[#allocation11 + $0x58] sm:$0xf]
    %v1835 = vld [vmem:[#allocation11 + $0x5c] sm:$0xf]
    %v1836 = vld [vmem:[#allocation11 + $0x60] sm:$0xf]
    %v1837 = vld [vmem:[#allocation11 + $0x64] sm:$0xf]
    %v1838 = vld [vmem:[#allocation11 + $0x68] sm:$0xf]
    %v1839 = vld [vmem:[#allocation11 + $0x6c] sm:$0xf]
    %v1840 = vld [vmem:[#allocation11 + $0x70] sm:$0xf]
    %v1841 = vld [vmem:[#allocation11 + $0x74] sm:$0xf]
    %v1842 = vld [vmem:[#allocation11 + $0x78] sm:$0xf]
    %v1843 = vld [vmem:[#allocation11 + $0x7c] sm:$0xf]
    %v1844 = vld [vmem:[#allocation11 + $0x80] sm:$0xf]
    %v1845 = vld [vmem:[#allocation11 + $0x84] sm:$0xf]
    %v1846 = vld [vmem:[#allocation11 + $0x88] sm:$0xf]
    %v1847 = vld [vmem:[#allocation11 + $0x8c] sm:$0xf]
    %v1848 = vld [vmem:[#allocation11 + $0x90] sm:$0xf]
    %v1849 = vld [vmem:[#allocation11 + $0x94] sm:$0xf]
    %v1850 = vld [vmem:[#allocation11 + $0x98] sm:$0xf]
    %v1851 = vld [vmem:[#allocation11 + $0x9c] sm:$0xf]
    %v1852 = vld [vmem:[#allocation11 + $0xa0] sm:$0xf]
    %v1853 = vld [vmem:[#allocation11 + $0xa4] sm:$0xf]
    %v1854 = vld [vmem:[#allocation11 + $0xa8] sm:$0xf]
    %v1855 = vld [vmem:[#allocation11 + $0xac] sm:$0xf]
    %v1856 = vld [vmem:[#allocation11 + $0xb0] sm:$0xf]
    %v1857 = vld [vmem:[#allocation11 + $0xb4] sm:$0xf]
    %v1858 = vld [vmem:[#allocation11 + $0xb8] sm:$0xf]
    %v1859 = vld [vmem:[#allocation11 + $0xbc] sm:$0xf]
    %v1860 = vld [vmem:[#allocation11 + $0xc0] sm:$0xf]
    %v1861 = vld [vmem:[#allocation11 + $0xc4] sm:$0xf]
    %v1862 = vld [vmem:[#allocation11 + $0xc8] sm:$0xf]
    %v1863 = vld [vmem:[#allocation11 + $0xcc] sm:$0xf]
    %v1864 = vld [vmem:[#allocation11 + $0xd0] sm:$0xf]
    %v1865 = vld [vmem:[#allocation11 + $0xd4] sm:$0xf]
    %v1866 = vld [vmem:[#allocation11 + $0xd8] sm:$0xf]
    %v1867 = vld [vmem:[#allocation11 + $0xdc] sm:$0xf]
    %v1868 = vld [vmem:[#allocation11 + $0xe0] sm:$0xf]
    %v1869 = vld [vmem:[#allocation11 + $0xe4] sm:$0xf]
    %v1870 = vld [vmem:[#allocation11 + $0xe8] sm:$0xf]
    %v1871 = vld [vmem:[#allocation11 + $0xec] sm:$0xf]
    %v1872 = vld [vmem:[#allocation11 + $0xf0] sm:$0xf]
    %v1873 = vld [vmem:[#allocation11 + $0xf4] sm:$0xf]
    %v1874 = vld [vmem:[#allocation11 + $0xf8] sm:$0xf]
    %v1875 = vld [vmem:[#allocation11 + $0xfc] sm:$0xf]
    %v1876 = vld [vmem:[%s6] sm:$0x1]
    %v1878 = vperm.slane %v1876, 0
    %v1944 = vunpack.c.l.b16 %v1812
    %v1945 = vunpack.c.l.b16 %v1813
    %v1946 = vunpack.c.l.b16 %v1814
    %v1947 = vunpack.c.l.b16 %v1815
    %v1948 = vunpack.c.l.b16 %v1816
    %v1949 = vunpack.c.l.b16 %v1817
    %v1950 = vunpack.c.l.b16 %v1818
    %v1951 = vunpack.c.l.b16 %v1819
    %v1952 = vunpack.c.l.b16 %v1820
    %v1953 = vunpack.c.l.b16 %v1821
    %v1954 = vunpack.c.l.b16 %v1822
    %v1955 = vunpack.c.l.b16 %v1823
    %v1956 = vunpack.c.l.b16 %v1824
    %v1957 = vunpack.c.l.b16 %v1825
    %v1958 = vunpack.c.l.b16 %v1826
    %v1959 = vunpack.c.l.b16 %v1827
    %v1960 = vunpack.c.l.b16 %v1828
    %v1961 = vunpack.c.l.b16 %v1829
    %v1962 = vunpack.c.l.b16 %v1830
    %v1963 = vunpack.c.l.b16 %v1831
    %v1964 = vunpack.c.l.b16 %v1832
    %v1965 = vunpack.c.l.b16 %v1833
    %v1966 = vunpack.c.l.b16 %v1834
    %v1967 = vunpack.c.l.b16 %v1835
    %v1968 = vunpack.c.l.b16 %v1836
    %v1969 = vunpack.c.l.b16 %v1837
    %v1970 = vunpack.c.l.b16 %v1838
    %v1971 = vunpack.c.l.b16 %v1839
    %v1972 = vunpack.c.l.b16 %v1840
    %v1973 = vunpack.c.l.b16 %v1841
    %v1974 = vunpack.c.l.b16 %v1842
    %v1975 = vunpack.c.l.b16 %v1843
    %v1976 = vunpack.c.l.b16 %v1844
    %v1977 = vunpack.c.l.b16 %v1845
    %v1978 = vunpack.c.l.b16 %v1846
    %v1979 = vunpack.c.l.b16 %v1847
    %v1980 = vunpack.c.l.b16 %v1848
    %v1981 = vunpack.c.l.b16 %v1849
    %v1982 = vunpack.c.l.b16 %v1850
    %v1983 = vunpack.c.l.b16 %v1851
    %v1984 = vunpack.c.l.b16 %v1852
    %v1985 = vunpack.c.l.b16 %v1853
    %v1986 = vunpack.c.l.b16 %v1854
    %v1987 = vunpack.c.l.b16 %v1855
    %v1988 = vunpack.c.l.b16 %v1856
    %v1989 = vunpack.c.l.b16 %v1857
    %v1990 = vunpack.c.l.b16 %v1858
    %v1991 = vunpack.c.l.b16 %v1859
    %v1992 = vunpack.c.l.b16 %v1860
    %v1993 = vunpack.c.l.b16 %v1861
    %v1994 = vunpack.c.l.b16 %v1862
    %v1995 = vunpack.c.l.b16 %v1863
    %v1996 = vunpack.c.l.b16 %v1864
    %v1997 = vunpack.c.l.b16 %v1865
    %v1998 = vunpack.c.l.b16 %v1866
    %v1999 = vunpack.c.l.b16 %v1867
    %v2000 = vunpack.c.l.b16 %v1868
    %v2001 = vunpack.c.l.b16 %v1869
    %v2002 = vunpack.c.l.b16 %v1870
    %v2003 = vunpack.c.l.b16 %v1871
    %v2004 = vunpack.c.l.b16 %v1872
    %v2005 = vunpack.c.l.b16 %v1873
    %v2006 = vunpack.c.l.b16 %v1874
    %v2007 = vunpack.c.l.b16 %v1875
    %v2008 = vpack.c.b16 %v1945, %v1944
    %v2009 = vpack.c.b16 %v1947, %v1946
    %v2010 = vpack.c.b16 %v1949, %v1948
    %v2011 = vpack.c.b16 %v1951, %v1950
    %v2012 = vpack.c.b16 %v1953, %v1952
    %v2013 = vpack.c.b16 %v1955, %v1954
    %v2014 = vpack.c.b16 %v1957, %v1956
    %v2015 = vpack.c.b16 %v1959, %v1958
    %v2016 = vpack.c.b16 %v1961, %v1960
    %v2017 = vpack.c.b16 %v1963, %v1962
    %v2018 = vpack.c.b16 %v1965, %v1964
    %v2019 = vpack.c.b16 %v1967, %v1966
    %v2020 = vpack.c.b16 %v1969, %v1968
    %v2021 = vpack.c.b16 %v1971, %v1970
    %v2022 = vpack.c.b16 %v1973, %v1972
    %v2023 = vpack.c.b16 %v1975, %v1974
    %v2024 = vpack.c.b16 %v1977, %v1976
    %v2025 = vpack.c.b16 %v1979, %v1978
    %v2026 = vpack.c.b16 %v1981, %v1980
    %v2027 = vpack.c.b16 %v1983, %v1982
    %v2028 = vpack.c.b16 %v1985, %v1984
    %v2029 = vpack.c.b16 %v1987, %v1986
    %v2030 = vpack.c.b16 %v1989, %v1988
    %v2031 = vpack.c.b16 %v1991, %v1990
    %v2032 = vpack.c.b16 %v1993, %v1992
    %v2033 = vpack.c.b16 %v1995, %v1994
    %v2034 = vpack.c.b16 %v1997, %v1996
    %v2035 = vpack.c.b16 %v1999, %v1998
    %v2036 = vpack.c.b16 %v2001, %v2000
    %v2037 = vpack.c.b16 %v2003, %v2002
    %v2038 = vpack.c.b16 %v2005, %v2004
    %v2039 = vpack.c.b16 %v2007, %v2006
    %2072 = vmatpush.bf16.msra.mxu0 %v2015
    %2073 = vmatpush.bf16.msra.mxu0 %v2014
    %2074 = vmatpush.bf16.msra.mxu0 %v2013
    %2075 = vmatpush.bf16.msra.mxu0 %v2012
    %2076 = vmatpush.bf16.msra.mxu0 %v2011
    %2077 = vmatpush.bf16.msra.mxu0 %v2010
    %2078 = vmatpush.bf16.msra.mxu0 %v2009
    %2079 = vmatpush.bf16.msra.mxu0 %v2008
    %2080 = vmatmul.bf16.gmra.mxu0 %v1808
    %v2081 = vpop.f32.mrf.mxu0
    %v2082 = vadd.f32 %v1878, %v2081
    %v2083 = vpop.f32.mrf.mxu0
    %2084 = vdwg.mxu0
    %2085 = vmatpush.bf16.msra.mxu0 %v2023
    %2086 = vmatpush.bf16.msra.mxu0 %v2022
    %2087 = vmatpush.bf16.msra.mxu0 %v2021
    %2088 = vmatpush.bf16.msra.mxu0 %v2020
    %2089 = vmatpush.bf16.msra.mxu0 %v2019
    %2090 = vmatpush.bf16.msra.mxu0 %v2018
    %2091 = vmatpush.bf16.msra.mxu0 %v2017
    %2092 = vmatpush.bf16.msra.mxu0 %v2016
    %2093 = vmatmul.bf16.gmra.mxu0 %v1809
    %v2094 = vpop.f32.mrf.mxu0
    %v2095 = vadd.f32 %v2082, %v2094
    %v2096 = vpop.f32.mrf.mxu0
    %2097 = vdwg.mxu0
    %2098 = vmatpush.bf16.msra.mxu0 %v2031
    %2099 = vmatpush.bf16.msra.mxu0 %v2030
    %2100 = vmatpush.bf16.msra.mxu0 %v2029
    %2101 = vmatpush.bf16.msra.mxu0 %v2028
    %2102 = vmatpush.bf16.msra.mxu0 %v2027
    %2103 = vmatpush.bf16.msra.mxu0 %v2026
    %2104 = vmatpush.bf16.msra.mxu0 %v2025
    %2105 = vmatpush.bf16.msra.mxu0 %v2024
    %2106 = vmatmul.bf16.gmra.mxu0 %v1810
    %v2107 = vpop.f32.mrf.mxu0
    %v2108 = vadd.f32 %v2095, %v2107
    %v2109 = vpop.f32.mrf.mxu0
    %2110 = vdwg.mxu0
    %2111 = vmatpush.bf16.msra.mxu0 %v2039
    %2112 = vmatpush.bf16.msra.mxu0 %v2038
    %2113 = vmatpush.bf16.msra.mxu0 %v2037
    %2114 = vmatpush.bf16.msra.mxu0 %v2036
    %2115 = vmatpush.bf16.msra.mxu0 %v2035
    %2116 = vmatpush.bf16.msra.mxu0 %v2034
    %2117 = vmatpush.bf16.msra.mxu0 %v2033
    %2118 = vmatpush.bf16.msra.mxu0 %v2032
    %2119 = vmatmul.bf16.gmra.mxu0 %v1811
    %v2120 = vpop.f32.mrf.mxu0
    %v2121 = vadd.f32 %v2108, %v2120
    %v2122 = vpop.f32.mrf.mxu0
    %2123 = vdwg.mxu0
    %v2124 = vtanh.pop %v2121
    %v2125 = vpack.c.bf16 %v2124, %v2124
    %v2126 = vld [vmem:[#allocation13] sm:$0xf]
    %v2127 = vld [vmem:[#allocation13 + $0x4] sm:$0xf]
    %v2128 = vld [vmem:[#allocation13 + $0x8] sm:$0xf]
    %v2129 = vld [vmem:[#allocation13 + $0xc] sm:$0xf]
    %v2130 = vld [vmem:[#allocation13 + $0x10] sm:$0xf]
    %v2131 = vld [vmem:[#allocation13 + $0x14] sm:$0xf]
    %v2132 = vld [vmem:[#allocation13 + $0x18] sm:$0xf]
    %v2133 = vld [vmem:[#allocation13 + $0x1c] sm:$0xf]
    %v2134 = vld [vmem:[#allocation13 + $0x20] sm:$0xf]
    %v2135 = vld [vmem:[#allocation13 + $0x24] sm:$0xf]
    %v2136 = vld [vmem:[#allocation13 + $0x28] sm:$0xf]
    %v2137 = vld [vmem:[#allocation13 + $0x2c] sm:$0xf]
    %v2138 = vld [vmem:[#allocation13 + $0x30] sm:$0xf]
    %v2139 = vld [vmem:[#allocation13 + $0x34] sm:$0xf]
    %v2140 = vld [vmem:[#allocation13 + $0x38] sm:$0xf]
    %v2141 = vld [vmem:[#allocation13 + $0x3c] sm:$0xf]
    %v2142 = vld [vmem:[%s8] sm:$0x1]
    %v2144 = vperm.slane %v2142, 0
    %v2162 = vunpack.c.l.b16 %v2126
    %v2163 = vunpack.c.l.b16 %v2127
    %v2164 = vunpack.c.l.b16 %v2128
    %v2165 = vunpack.c.l.b16 %v2129
    %v2166 = vunpack.c.l.b16 %v2130
    %v2167 = vunpack.c.l.b16 %v2131
    %v2168 = vunpack.c.l.b16 %v2132
    %v2169 = vunpack.c.l.b16 %v2133
    %v2170 = vunpack.c.l.b16 %v2134
    %v2171 = vunpack.c.l.b16 %v2135
    %v2172 = vunpack.c.l.b16 %v2136
    %v2173 = vunpack.c.l.b16 %v2137
    %v2174 = vunpack.c.l.b16 %v2138
    %v2175 = vunpack.c.l.b16 %v2139
    %v2176 = vunpack.c.l.b16 %v2140
    %v2177 = vunpack.c.l.b16 %v2141
    %v2178 = vpack.c.b16 %v2163, %v2162
    %v2179 = vpack.c.b16 %v2165, %v2164
    %v2180 = vpack.c.b16 %v2167, %v2166
    %v2181 = vpack.c.b16 %v2169, %v2168
    %v2182 = vpack.c.b16 %v2171, %v2170
    %v2183 = vpack.c.b16 %v2173, %v2172
    %v2184 = vpack.c.b16 %v2175, %v2174
    %v2185 = vpack.c.b16 %v2177, %v2176
    %2194 = vmatpush.bf16.msra.mxu0 %v2185
    %2195 = vmatpush.bf16.msra.mxu0 %v2184
    %2196 = vmatpush.bf16.msra.mxu0 %v2183
    %2197 = vmatpush.bf16.msra.mxu0 %v2182
    %2198 = vmatpush.bf16.msra.mxu0 %v2181
    %2199 = vmatpush.bf16.msra.mxu0 %v2180
    %2200 = vmatpush.bf16.msra.mxu0 %v2179
    %2201 = vmatpush.bf16.msra.mxu0 %v2178
    %2202 = vmatmul.bf16.gmra.mxu0 %v2125
    %v2203 = vpop.f32.mrf.mxu0
    %v2204 = vadd.f32 %v2144, %v2203
    %v2205 = vpop.f32.mrf.mxu0
    %2206 = vdwg.mxu0
    %2207 = vst [vmem:[#allocation14] sm:$0xff] %v2204
    // Predicated region
    $region66: #{tpu_custom_call.1} parent=1 // pred_check
      _
    $region67: #{tpu_custom_call.1} parent=1 // pred_check_branch
      %2209 = sbr.rel (0) target = $region69
    $region68: #{tpu_custom_call.1} parent=1 // pred_region
      %2211 = vsyncadd [#allocation4], 0
      %s2213 = sshll.u32 [#allocation14], 4
      %s2214 = int_to_ptr.vmem [resolvable:$true] %s2213
      %s2215 = sshll.u32 %s9, 4
      %s2216 = int_to_ptr.hbm [resolvable:$true] %s2215
      %2218 = dma.vmem_to_hbm [thread:$0]  %s2214, 128, %s2216, [#allocation4]
    $region69: #{tpu_custom_call.1} parent=1 // pred_fallthru
      _
    // Predicated region
    $region70: #{tpu_custom_call.1} parent=1 // pred_check
      _
    $region71: #{tpu_custom_call.1} parent=1 // pred_check_branch
      %2220 = sbr.rel (0) target = $region73
    $region72: #{tpu_custom_call.1} parent=1 // pred_region
      %2222 = dma.done [#allocation4], 128
    $region73: #{tpu_custom_call.1} parent=1 // pred_fallthru
      _
    %2223 = vsyncpa [#allocation3], 1
    %2224 = vsyncpa [#allocation6], 1
    %2225 = vsyncpa [#allocation9], 1
    %2226 = vsyncpa [#allocation12], 1
    %2227 = vsyncpa [#allocation4], 1

</llo_original>
